<compile_context>
chip_gen: v6e
topology: v6e:2x2x1
jax: 0.10.0
libtpu: 0.0.40
codegen_flags: <defaults>
</compile_context>

<pallas_src>
from functools import partial

import jax
import jax.numpy as jnp
from jax import lax
from jax.experimental import pallas as pl
from jax.experimental.pallas import tpu as pltpu


def _tpu_generation():
    """Best-effort TPU generation (4/5/6/7; 0 if unknown) from device_kind."""
    try:
        kind = jax.devices()[0].device_kind.lower().replace(" ", "")
    except Exception:
        return 0
    for g in (7, 6, 5, 4):
        if (f"v{g}" in kind) or (f"tpu{g}" in kind):
            return g
    return 0


def _auto_elementwise_dtype(compute_dtype, gen):
    """bf16 elementwise only where the VPU has a bf16 datapath (v6e / v7x)."""
    if jnp.dtype(compute_dtype) == jnp.dtype(jnp.float32):
        return jnp.dtype(jnp.float32)
    return jnp.dtype(compute_dtype) if gen >= 6 else jnp.dtype(jnp.float32)


def _mlp_kernel(x_ref, w_in_ref, b_in_ref, w_h_ref, b_h_ref, w_out_ref,
                b_out_ref, o_ref, *, num_hidden_layers, compute_dtype,
                elem_dtype):
    # x block arrives in native (block_batch, input_dim) layout; cast to the
    # MXU operand dtype in-kernel (no wrapper-side HBM passes over x).
    x_blk = x_ref[...].astype(compute_dtype)

    # First layer: contract over x's feature dim directly.
    #   (hidden, in) x (bb, in) --contract dim 1 of both--> (hidden, bb)
    # Batch stays on the lane axis for the whole network.
    hT = lax.dot_general(
        w_in_ref[...], x_blk,
        dimension_numbers=(((1,), (1,)), ((), ())),
        preferred_element_type=elem_dtype)
    hT = jnp.maximum(hT + b_in_ref[...], 0.0)

    # Hidden layers, statically unrolled (small fixed count).
    # On v6e/v7x elem_dtype == compute_dtype (bf16) -> no per-layer repack.
    # On v5e elem_dtype == f32 -> only the MXU operand cast remains.
    for l in range(num_hidden_layers):
        lhs = hT if hT.dtype == compute_dtype else hT.astype(compute_dtype)
        hT = jnp.dot(w_h_ref[l], lhs, preferred_element_type=elem_dtype)
        hT = jnp.maximum(hT + b_h_ref[l], 0.0)

    # Output head as VPU multiply + sublane reduce (skips an M=1 MXU matmul
    # push+pop at the end of each step's serial chain).  f32 accumulation.
    prod = hT.astype(jnp.float32) * w_out_ref[...]          # (hidden, bb)
    outT = jnp.sum(prod, axis=0, keepdims=True) + b_out_ref[0]
    o_ref[...] = outT.astype(o_ref.dtype)                   # lane-dense row


def deep_network_sdf(x, params, *, block_batch=4096,
                     compute_dtype=jnp.bfloat16, elementwise_dtype=None):
    """Forward pass of DeepNetworkSDF via a single Pallas TPU kernel.

    x: (N, input_dim) in its native layout.  params in PyTorch nn.Linear
    layout (out_features, in_features).  Returns (N, 1) in x.dtype.
    """
    w_in, b_in, w_h, b_h, w_out, b_out = params
    n, input_dim = x.shape
    hidden_dim = w_in.shape[0]
    num_hidden = w_h.shape[0]

    gen = _tpu_generation()
    compute_dtype = jnp.dtype(compute_dtype)
    if elementwise_dtype is None:
        elementwise_dtype = _auto_elementwise_dtype(compute_dtype, gen)
    elem_dtype = jnp.dtype(elementwise_dtype)

    assert block_batch % 128 == 0, "block_batch must be a multiple of 128"
    n128 = pl.cdiv(n, 128) * 128
    bb = min(block_batch, n128)
    # Only v7x has 2 TensorCores sharing the "parallel" grid axis: keep >= 2
    # grid steps there by splitting the LARGEST tile in half (>= 512 each).
    # On single-TC v5e/v6e a split only adds per-step overhead, so skip it.
    if gen >= 7 and bb >= n128 and n128 >= 1024:
        bb = pl.cdiv(n128 // 2, 128) * 128
    grid_steps = pl.cdiv(n, bb)
    n_pad = grid_steps * bb

    # MXU operands in compute_dtype; biases in the elementwise dtype; the
    # output head weight/bias stay f32 (head runs on VPU/XLU in f32).
    w_in_c = w_in.astype(compute_dtype)                        # (h, in)
    w_h_c = w_h.astype(compute_dtype)                          # (L-1, h, h)
    b_in_e = b_in.astype(elem_dtype).reshape(hidden_dim, 1)
    b_h_e = b_h.astype(elem_dtype).reshape(num_hidden, hidden_dim, 1)
    w_out_col = w_out.astype(jnp.float32).reshape(hidden_dim, 1)
    b_out_s = b_out.astype(jnp.float32).reshape(1,)            # SMEM scalar

    kernel = partial(_mlp_kernel, num_hidden_layers=num_hidden,
                     compute_dtype=compute_dtype, elem_dtype=elem_dtype)

    flops = 2 * n_pad * (input_dim * hidden_dim
                         + num_hidden * hidden_dim * hidden_dim
                         + hidden_dim)
    bytes_accessed = int(
        n_pad * input_dim * x.dtype.itemsize            # streamed x (native)
        + n_pad * x.dtype.itemsize                      # output row
        + w_in_c.size * w_in_c.dtype.itemsize
        + w_h_c.size * w_h_c.dtype.itemsize
        + (b_in_e.size + b_h_e.size) * elem_dtype.itemsize
        + (w_out_col.size + b_out_s.size) * 4)
    cost = pl.CostEstimate(flops=flops, transcendentals=0,
                           bytes_accessed=bytes_accessed)

    out_T = pl.pallas_call(
        kernel,
        out_shape=jax.ShapeDtypeStruct((1, n_pad), x.dtype),
        grid_spec=pltpu.PrefetchScalarGridSpec(
            num_scalar_prefetch=0,
            grid=(grid_steps,),
            in_specs=[
                # x in native layout, tiled over batch rows.  A partial final
                # block (ragged N) is masked by Pallas; its lanes are garbage
                # only in columns that the wrapper slices off.
                pl.BlockSpec((bb, input_dim), lambda i: (i, 0)),
                # Weights/biases: constant index maps -> block index never
                # changes, so the pipeline keeps them resident (no re-DMA).
                pl.BlockSpec((hidden_dim, input_dim), lambda i: (0, 0)),
                pl.BlockSpec((hidden_dim, 1), lambda i: (0, 0)),
                pl.BlockSpec((num_hidden, hidden_dim, hidden_dim),
                             lambda i: (0, 0, 0)),
                pl.BlockSpec((num_hidden, hidden_dim, 1),
                             lambda i: (0, 0, 0)),
                pl.BlockSpec((hidden_dim, 1), lambda i: (0, 0)),
                # b_out: single scalar -> SMEM (no 1-useful-lane vreg block).
                pl.BlockSpec(memory_space=pltpu.MemorySpace.SMEM),
            ],
            # Lane-dense output row -> unmasked vector stores.
            out_specs=pl.BlockSpec((1, bb), lambda i: (0, i)),
        ),
        compiler_params=pltpu.CompilerParams(
            dimension_semantics=("parallel",)),
        cost_estimate=cost,
    )(x, w_in_c, b_in_e, w_h_c, b_h_e, w_out_col, b_out_s)

    return out_T[0, :n].reshape(n, 1)


def init_params(key, input_dim, hidden_dim, num_layers, dtype=jnp.float32):
    """PyTorch-layout params, U(-1/sqrt(fan_in), 1/sqrt(fan_in)) init."""
    num_hidden = num_layers - 1
    keys = jax.random.split(key, 6)

    def uni(k, shape, fan_in):
        bound = float(fan_in) ** -0.5
        return jax.random.uniform(k, shape, dtype, -bound, bound)

    w_in = uni(keys[0], (hidden_dim, input_dim), input_dim)
    b_in = uni(keys[1], (hidden_dim,), input_dim)
    w_h = uni(keys[2], (num_hidden, hidden_dim, hidden_dim), hidden_dim)
    b_h = uni(keys[3], (num_hidden, hidden_dim), hidden_dim)
    w_out = uni(keys[4], (1, hidden_dim), hidden_dim)
    b_out = uni(keys[5], (1,), hidden_dim)
    return w_in, b_in, w_h, b_h, w_out, b_out


def reference_forward(x, params, compute_dtype=jnp.float32,
                      elementwise_dtype=jnp.float32):
    """Pure-JAX reference mirroring the kernel's casting/rounding points."""
    w_in, b_in, w_h, b_h, w_out, b_out = params
    cdt = jnp.dtype(compute_dtype)
    edt = jnp.dtype(elementwise_dtype)
    h = jnp.dot(x.astype(cdt), w_in.astype(cdt).T, preferred_element_type=edt)
    h = jnp.maximum(h + b_in.astype(edt), 0.0)
    for l in range(w_h.shape[0]):
        h = jnp.dot(h.astype(cdt), w_h[l].astype(cdt).T,
                    preferred_element_type=edt)
        h = jnp.maximum(h + b_h[l].astype(edt), 0.0)
    out = jnp.dot(h.astype(jnp.float32), w_out.astype(jnp.float32).T,
                  preferred_element_type=jnp.float32) + b_out.astype(jnp.float32)
    return out.reshape(x.shape[0], 1)


if __name__ == "__main__":
    key = jax.random.PRNGKey(0)
    k_x, k_p = jax.random.split(key)

    batch = 256
    input_dim = 16
    hidden_dim = 32
    num_layers = 10

    x = jax.random.normal(k_x, (batch, input_dim), jnp.float32)
    params = init_params(k_p, input_dim, hidden_dim, num_layers)
    gen = _tpu_generation()

    # 1) f32 MXU + f32 elementwise: tight check against the plain reference.
    out_f32 = jax.block_until_ready(
        deep_network_sdf(x, params, compute_dtype=jnp.float32))
    ref_f32 = reference_forward(x, params, jnp.float32, jnp.float32)
    assert out_f32.shape == (batch, 1)
    err32 = jnp.max(jnp.abs(out_f32 - ref_f32))
    assert jnp.allclose(out_f32, ref_f32, atol=2e-5, rtol=1e-4), (
        f"f32 max abs err {err32}")

    # 2) bf16 MXU path (default).  Elementwise dtype is chosen per chip
    #    (bf16 on v6e/v7x, f32 on v5e); mirror it in the reference.
    elem = _auto_elementwise_dtype(jnp.bfloat16, gen)
    out_bf16 = jax.block_until_ready(
        deep_network_sdf(x, params, compute_dtype=jnp.bfloat16))
    ref_bf16 = reference_forward(x, params, jnp.bfloat16, elem)
    errbf = jnp.max(jnp.abs(out_bf16 - ref_bf16))
    assert jnp.allclose(out_bf16, ref_bf16, atol=5e-3, rtol=3e-2), (
        f"bf16 max abs err {errbf}")

    # 3) Ragged batch (exercises the masked partial final input block).
    xr = x[:200]
    out_r = jax.block_until_ready(
        deep_network_sdf(xr, params, compute_dtype=jnp.float32))
    ref_r = reference_forward(xr, params, jnp.float32, jnp.float32)
    assert out_r.shape == (200, 1)
    assert jnp.allclose(out_r, ref_r, atol=2e-5, rtol=1e-4)

    print("KERNEL_OK")
</pallas_src>

<mosaic_0001>
module attributes {stable_mosaic.version = 11 : i64} {
  func.func @_mlp_kernel(%arg0: i32, %arg1: memref<256x16xf32, #tpu.memory_space<vmem>>, %arg2: memref<32x16xf32, #tpu.memory_space<vmem>>, %arg3: memref<32x1xf32, #tpu.memory_space<vmem>>, %arg4: memref<9x32x32xf32, #tpu.memory_space<vmem>>, %arg5: memref<9x32x1xf32, #tpu.memory_space<vmem>>, %arg6: memref<32x1xf32, #tpu.memory_space<vmem>>, %arg7: memref<1xf32, #tpu.memory_space<smem>>, %arg8: memref<1x256xf32, #tpu.memory_space<vmem>>) attributes {dimension_semantics = [#tpu.dimension_semantics<parallel>], iteration_bounds = array<i64: 1>, scalar_prefetch = 0 : i64, scratch_operands = 0 : i64, tpu.core_type = #tpu.core_type<tc>, window_params = [{transform_indices = @transform_0, window_bounds = array<i64: 256, 16>}, {pipeline_mode = #tpu.pipeline_mode<synchronous>, transform_indices = @transform_1, window_bounds = array<i64: 32, 16>}, {pipeline_mode = #tpu.pipeline_mode<synchronous>, transform_indices = @transform_2, window_bounds = array<i64: 32, 1>}, {pipeline_mode = #tpu.pipeline_mode<synchronous>, transform_indices = @transform_3, window_bounds = array<i64: 9, 32, 32>}, {pipeline_mode = #tpu.pipeline_mode<synchronous>, transform_indices = @transform_4, window_bounds = array<i64: 9, 32, 1>}, {pipeline_mode = #tpu.pipeline_mode<synchronous>, transform_indices = @transform_5, window_bounds = array<i64: 32, 1>}, {transform_indices = @transform_6, window_bounds = array<i64: 1>}, {transform_indices = @transform_7, window_bounds = array<i64: 1, 256>}]} {
    %c0 = arith.constant 0 : index
    %c0_0 = arith.constant 0 : index
    %0 = vector.load %arg1[%c0, %c0_0] : memref<256x16xf32, #tpu.memory_space<vmem>>, vector<256x16xf32>
    %c0_1 = arith.constant 0 : index
    %c0_2 = arith.constant 0 : index
    %1 = vector.load %arg2[%c0_1, %c0_2] : memref<32x16xf32, #tpu.memory_space<vmem>>, vector<32x16xf32>
    %cst = arith.constant dense<0.000000e+00> : vector<32x256xf32>
    %2 = tpu.matmul %1, %0, %cst {dimension_numbers = #tpu.dot_dimension_numbers<[1], [1], [0], [0], [0, 0, 1, 0], [], []>} : vector<32x16xf32>, vector<256x16xf32>, vector<32x256xf32> -> vector<32x256xf32>
    %c0_3 = arith.constant 0 : index
    %c0_4 = arith.constant 0 : index
    %3 = vector.load %arg3[%c0_3, %c0_4] : memref<32x1xf32, #tpu.memory_space<vmem>>, vector<32x1xf32>
    %4 = vector.broadcast %3 : vector<32x1xf32> to vector<32x256xf32>
    %5 = arith.addf %2, %4 : vector<32x256xf32>
    %cst_5 = arith.constant 0.000000e+00 : f32
    %6 = vector.broadcast %cst_5 : f32 to vector<32x256xf32>
    %7 = arith.maximumf %5, %6 : vector<32x256xf32>
    %c0_6 = arith.constant 0 : index
    %c0_7 = arith.constant 0 : index
    %c0_8 = arith.constant 0 : index
    %8 = vector.load %arg4[%c0_6, %c0_7, %c0_8] : memref<9x32x32xf32, #tpu.memory_space<vmem>>, vector<1x32x32xf32>
    %9 = vector.shape_cast %8 : vector<1x32x32xf32> to vector<32x32xf32>
    %cst_9 = arith.constant dense<0.000000e+00> : vector<32x256xf32>
    %10 = tpu.matmul %9, %7, %cst_9 {dimension_numbers = #tpu.dot_dimension_numbers<[1], [0], [0], [1], [0, 0, 1, 1], [], []>} : vector<32x32xf32>, vector<32x256xf32>, vector<32x256xf32> -> vector<32x256xf32>
    %c0_10 = arith.constant 0 : index
    %c0_11 = arith.constant 0 : index
    %c0_12 = arith.constant 0 : index
    %11 = vector.load %arg5[%c0_10, %c0_11, %c0_12] : memref<9x32x1xf32, #tpu.memory_space<vmem>>, vector<1x32x1xf32>
    %12 = vector.shape_cast %11 : vector<1x32x1xf32> to vector<32x1xf32>
    %13 = vector.broadcast %12 : vector<32x1xf32> to vector<32x256xf32>
    %14 = arith.addf %10, %13 : vector<32x256xf32>
    %cst_13 = arith.constant 0.000000e+00 : f32
    %15 = vector.broadcast %cst_13 : f32 to vector<32x256xf32>
    %16 = arith.maximumf %14, %15 : vector<32x256xf32>
    %c1 = arith.constant 1 : index
    %c0_14 = arith.constant 0 : index
    %c0_15 = arith.constant 0 : index
    %17 = vector.load %arg4[%c1, %c0_14, %c0_15] : memref<9x32x32xf32, #tpu.memory_space<vmem>>, vector<1x32x32xf32>
    %18 = vector.shape_cast %17 : vector<1x32x32xf32> to vector<32x32xf32>
    %cst_16 = arith.constant dense<0.000000e+00> : vector<32x256xf32>
    %19 = tpu.matmul %18, %16, %cst_16 {dimension_numbers = #tpu.dot_dimension_numbers<[1], [0], [0], [1], [0, 0, 1, 1], [], []>} : vector<32x32xf32>, vector<32x256xf32>, vector<32x256xf32> -> vector<32x256xf32>
    %c1_17 = arith.constant 1 : index
    %c0_18 = arith.constant 0 : index
    %c0_19 = arith.constant 0 : index
    %20 = vector.load %arg5[%c1_17, %c0_18, %c0_19] : memref<9x32x1xf32, #tpu.memory_space<vmem>>, vector<1x32x1xf32>
    %21 = vector.shape_cast %20 : vector<1x32x1xf32> to vector<32x1xf32>
    %22 = vector.broadcast %21 : vector<32x1xf32> to vector<32x256xf32>
    %23 = arith.addf %19, %22 : vector<32x256xf32>
    %cst_20 = arith.constant 0.000000e+00 : f32
    %24 = vector.broadcast %cst_20 : f32 to vector<32x256xf32>
    %25 = arith.maximumf %23, %24 : vector<32x256xf32>
    %c2 = arith.constant 2 : index
    %c0_21 = arith.constant 0 : index
    %c0_22 = arith.constant 0 : index
    %26 = vector.load %arg4[%c2, %c0_21, %c0_22] : memref<9x32x32xf32, #tpu.memory_space<vmem>>, vector<1x32x32xf32>
    %27 = vector.shape_cast %26 : vector<1x32x32xf32> to vector<32x32xf32>
    %cst_23 = arith.constant dense<0.000000e+00> : vector<32x256xf32>
    %28 = tpu.matmul %27, %25, %cst_23 {dimension_numbers = #tpu.dot_dimension_numbers<[1], [0], [0], [1], [0, 0, 1, 1], [], []>} : vector<32x32xf32>, vector<32x256xf32>, vector<32x256xf32> -> vector<32x256xf32>
    %c2_24 = arith.constant 2 : index
    %c0_25 = arith.constant 0 : index
    %c0_26 = arith.constant 0 : index
    %29 = vector.load %arg5[%c2_24, %c0_25, %c0_26] : memref<9x32x1xf32, #tpu.memory_space<vmem>>, vector<1x32x1xf32>
    %30 = vector.shape_cast %29 : vector<1x32x1xf32> to vector<32x1xf32>
    %31 = vector.broadcast %30 : vector<32x1xf32> to vector<32x256xf32>
    %32 = arith.addf %28, %31 : vector<32x256xf32>
    %cst_27 = arith.constant 0.000000e+00 : f32
    %33 = vector.broadcast %cst_27 : f32 to vector<32x256xf32>
    %34 = arith.maximumf %32, %33 : vector<32x256xf32>
    %c3 = arith.constant 3 : index
    %c0_28 = arith.constant 0 : index
    %c0_29 = arith.constant 0 : index
    %35 = vector.load %arg4[%c3, %c0_28, %c0_29] : memref<9x32x32xf32, #tpu.memory_space<vmem>>, vector<1x32x32xf32>
    %36 = vector.shape_cast %35 : vector<1x32x32xf32> to vector<32x32xf32>
    %cst_30 = arith.constant dense<0.000000e+00> : vector<32x256xf32>
    %37 = tpu.matmul %36, %34, %cst_30 {dimension_numbers = #tpu.dot_dimension_numbers<[1], [0], [0], [1], [0, 0, 1, 1], [], []>} : vector<32x32xf32>, vector<32x256xf32>, vector<32x256xf32> -> vector<32x256xf32>
    %c3_31 = arith.constant 3 : index
    %c0_32 = arith.constant 0 : index
    %c0_33 = arith.constant 0 : index
    %38 = vector.load %arg5[%c3_31, %c0_32, %c0_33] : memref<9x32x1xf32, #tpu.memory_space<vmem>>, vector<1x32x1xf32>
    %39 = vector.shape_cast %38 : vector<1x32x1xf32> to vector<32x1xf32>
    %40 = vector.broadcast %39 : vector<32x1xf32> to vector<32x256xf32>
    %41 = arith.addf %37, %40 : vector<32x256xf32>
    %cst_34 = arith.constant 0.000000e+00 : f32
    %42 = vector.broadcast %cst_34 : f32 to vector<32x256xf32>
    %43 = arith.maximumf %41, %42 : vector<32x256xf32>
    %c4 = arith.constant 4 : index
    %c0_35 = arith.constant 0 : index
    %c0_36 = arith.constant 0 : index
    %44 = vector.load %arg4[%c4, %c0_35, %c0_36] : memref<9x32x32xf32, #tpu.memory_space<vmem>>, vector<1x32x32xf32>
    %45 = vector.shape_cast %44 : vector<1x32x32xf32> to vector<32x32xf32>
    %cst_37 = arith.constant dense<0.000000e+00> : vector<32x256xf32>
    %46 = tpu.matmul %45, %43, %cst_37 {dimension_numbers = #tpu.dot_dimension_numbers<[1], [0], [0], [1], [0, 0, 1, 1], [], []>} : vector<32x32xf32>, vector<32x256xf32>, vector<32x256xf32> -> vector<32x256xf32>
    %c4_38 = arith.constant 4 : index
    %c0_39 = arith.constant 0 : index
    %c0_40 = arith.constant 0 : index
    %47 = vector.load %arg5[%c4_38, %c0_39, %c0_40] : memref<9x32x1xf32, #tpu.memory_space<vmem>>, vector<1x32x1xf32>
    %48 = vector.shape_cast %47 : vector<1x32x1xf32> to vector<32x1xf32>
    %49 = vector.broadcast %48 : vector<32x1xf32> to vector<32x256xf32>
    %50 = arith.addf %46, %49 : vector<32x256xf32>
    %cst_41 = arith.constant 0.000000e+00 : f32
    %51 = vector.broadcast %cst_41 : f32 to vector<32x256xf32>
    %52 = arith.maximumf %50, %51 : vector<32x256xf32>
    %c5 = arith.constant 5 : index
    %c0_42 = arith.constant 0 : index
    %c0_43 = arith.constant 0 : index
    %53 = vector.load %arg4[%c5, %c0_42, %c0_43] : memref<9x32x32xf32, #tpu.memory_space<vmem>>, vector<1x32x32xf32>
    %54 = vector.shape_cast %53 : vector<1x32x32xf32> to vector<32x32xf32>
    %cst_44 = arith.constant dense<0.000000e+00> : vector<32x256xf32>
    %55 = tpu.matmul %54, %52, %cst_44 {dimension_numbers = #tpu.dot_dimension_numbers<[1], [0], [0], [1], [0, 0, 1, 1], [], []>} : vector<32x32xf32>, vector<32x256xf32>, vector<32x256xf32> -> vector<32x256xf32>
    %c5_45 = arith.constant 5 : index
    %c0_46 = arith.constant 0 : index
    %c0_47 = arith.constant 0 : index
    %56 = vector.load %arg5[%c5_45, %c0_46, %c0_47] : memref<9x32x1xf32, #tpu.memory_space<vmem>>, vector<1x32x1xf32>
    %57 = vector.shape_cast %56 : vector<1x32x1xf32> to vector<32x1xf32>
    %58 = vector.broadcast %57 : vector<32x1xf32> to vector<32x256xf32>
    %59 = arith.addf %55, %58 : vector<32x256xf32>
    %cst_48 = arith.constant 0.000000e+00 : f32
    %60 = vector.broadcast %cst_48 : f32 to vector<32x256xf32>
    %61 = arith.maximumf %59, %60 : vector<32x256xf32>
    %c6 = arith.constant 6 : index
    %c0_49 = arith.constant 0 : index
    %c0_50 = arith.constant 0 : index
    %62 = vector.load %arg4[%c6, %c0_49, %c0_50] : memref<9x32x32xf32, #tpu.memory_space<vmem>>, vector<1x32x32xf32>
    %63 = vector.shape_cast %62 : vector<1x32x32xf32> to vector<32x32xf32>
    %cst_51 = arith.constant dense<0.000000e+00> : vector<32x256xf32>
    %64 = tpu.matmul %63, %61, %cst_51 {dimension_numbers = #tpu.dot_dimension_numbers<[1], [0], [0], [1], [0, 0, 1, 1], [], []>} : vector<32x32xf32>, vector<32x256xf32>, vector<32x256xf32> -> vector<32x256xf32>
    %c6_52 = arith.constant 6 : index
    %c0_53 = arith.constant 0 : index
    %c0_54 = arith.constant 0 : index
    %65 = vector.load %arg5[%c6_52, %c0_53, %c0_54] : memref<9x32x1xf32, #tpu.memory_space<vmem>>, vector<1x32x1xf32>
    %66 = vector.shape_cast %65 : vector<1x32x1xf32> to vector<32x1xf32>
    %67 = vector.broadcast %66 : vector<32x1xf32> to vector<32x256xf32>
    %68 = arith.addf %64, %67 : vector<32x256xf32>
    %cst_55 = arith.constant 0.000000e+00 : f32
    %69 = vector.broadcast %cst_55 : f32 to vector<32x256xf32>
    %70 = arith.maximumf %68, %69 : vector<32x256xf32>
    %c7 = arith.constant 7 : index
    %c0_56 = arith.constant 0 : index
    %c0_57 = arith.constant 0 : index
    %71 = vector.load %arg4[%c7, %c0_56, %c0_57] : memref<9x32x32xf32, #tpu.memory_space<vmem>>, vector<1x32x32xf32>
    %72 = vector.shape_cast %71 : vector<1x32x32xf32> to vector<32x32xf32>
    %cst_58 = arith.constant dense<0.000000e+00> : vector<32x256xf32>
    %73 = tpu.matmul %72, %70, %cst_58 {dimension_numbers = #tpu.dot_dimension_numbers<[1], [0], [0], [1], [0, 0, 1, 1], [], []>} : vector<32x32xf32>, vector<32x256xf32>, vector<32x256xf32> -> vector<32x256xf32>
    %c7_59 = arith.constant 7 : index
    %c0_60 = arith.constant 0 : index
    %c0_61 = arith.constant 0 : index
    %74 = vector.load %arg5[%c7_59, %c0_60, %c0_61] : memref<9x32x1xf32, #tpu.memory_space<vmem>>, vector<1x32x1xf32>
    %75 = vector.shape_cast %74 : vector<1x32x1xf32> to vector<32x1xf32>
    %76 = vector.broadcast %75 : vector<32x1xf32> to vector<32x256xf32>
    %77 = arith.addf %73, %76 : vector<32x256xf32>
    %cst_62 = arith.constant 0.000000e+00 : f32
    %78 = vector.broadcast %cst_62 : f32 to vector<32x256xf32>
    %79 = arith.maximumf %77, %78 : vector<32x256xf32>
    %c8 = arith.constant 8 : index
    %c0_63 = arith.constant 0 : index
    %c0_64 = arith.constant 0 : index
    %80 = vector.load %arg4[%c8, %c0_63, %c0_64] : memref<9x32x32xf32, #tpu.memory_space<vmem>>, vector<1x32x32xf32>
    %81 = vector.shape_cast %80 : vector<1x32x32xf32> to vector<32x32xf32>
    %cst_65 = arith.constant dense<0.000000e+00> : vector<32x256xf32>
    %82 = tpu.matmul %81, %79, %cst_65 {dimension_numbers = #tpu.dot_dimension_numbers<[1], [0], [0], [1], [0, 0, 1, 1], [], []>} : vector<32x32xf32>, vector<32x256xf32>, vector<32x256xf32> -> vector<32x256xf32>
    %c8_66 = arith.constant 8 : index
    %c0_67 = arith.constant 0 : index
    %c0_68 = arith.constant 0 : index
    %83 = vector.load %arg5[%c8_66, %c0_67, %c0_68] : memref<9x32x1xf32, #tpu.memory_space<vmem>>, vector<1x32x1xf32>
    %84 = vector.shape_cast %83 : vector<1x32x1xf32> to vector<32x1xf32>
    %85 = vector.broadcast %84 : vector<32x1xf32> to vector<32x256xf32>
    %86 = arith.addf %82, %85 : vector<32x256xf32>
    %cst_69 = arith.constant 0.000000e+00 : f32
    %87 = vector.broadcast %cst_69 : f32 to vector<32x256xf32>
    %88 = arith.maximumf %86, %87 : vector<32x256xf32>
    %c0_70 = arith.constant 0 : index
    %c0_71 = arith.constant 0 : index
    %89 = vector.load %arg6[%c0_70, %c0_71] : memref<32x1xf32, #tpu.memory_space<vmem>>, vector<32x1xf32>
    %90 = vector.broadcast %89 : vector<32x1xf32> to vector<32x256xf32>
    %91 = arith.mulf %88, %90 : vector<32x256xf32>
    %cst_72 = arith.constant dense<0.000000e+00> : vector<256xf32>
    %92 = vector.multi_reduction <add>, %91, %cst_72 [0] : vector<32x256xf32> to vector<256xf32>
    %93 = vector.shape_cast %92 : vector<256xf32> to vector<1x256xf32>
    %c0_73 = arith.constant 0 : index
    %94 = memref.load %arg7[%c0_73] : memref<1xf32, #tpu.memory_space<smem>>
    %95 = vector.broadcast %94 : f32 to vector<1x256xf32>
    %96 = arith.addf %93, %95 : vector<1x256xf32>
    %c0_74 = arith.constant 0 : index
    %c0_75 = arith.constant 0 : index
    %97 = vector.load %arg8[%c0_74, %c0_75] : memref<1x256xf32, #tpu.memory_space<vmem>>, vector<1x256xf32>
    tpu.vector_store %arg8[%c0_74, %c0_75], %96 {strides = array<i32>} : memref<1x256xf32, #tpu.memory_space<vmem>>, vector<1x256xf32>,
    return
  }
  func.func @transform_0(%arg0: i32) -> (i32, i32) {
    %c0_i32 = arith.constant 0 : i32
    %c0_i32_0 = arith.constant 0 : i32
    return %arg0, %c0_i32 : i32, i32
  }
  func.func @transform_1(%arg0: i32) -> (i32, i32) {
    %c0_i32 = arith.constant 0 : i32
    %c0_i32_0 = arith.constant 0 : i32
    %c0_i32_1 = arith.constant 0 : i32
    return %c0_i32, %c0_i32_0 : i32, i32
  }
  func.func @transform_2(%arg0: i32) -> (i32, i32) {
    %c0_i32 = arith.constant 0 : i32
    %c0_i32_0 = arith.constant 0 : i32
    %c0_i32_1 = arith.constant 0 : i32
    return %c0_i32, %c0_i32_0 : i32, i32
  }
  func.func @transform_3(%arg0: i32) -> (i32, i32, i32) {
    %c0_i32 = arith.constant 0 : i32
    %c0_i32_0 = arith.constant 0 : i32
    %c0_i32_1 = arith.constant 0 : i32
    %c0_i32_2 = arith.constant 0 : i32
    return %c0_i32, %c0_i32_0, %c0_i32_1 : i32, i32, i32
  }
  func.func @transform_4(%arg0: i32) -> (i32, i32, i32) {
    %c0_i32 = arith.constant 0 : i32
    %c0_i32_0 = arith.constant 0 : i32
    %c0_i32_1 = arith.constant 0 : i32
    %c0_i32_2 = arith.constant 0 : i32
    return %c0_i32, %c0_i32_0, %c0_i32_1 : i32, i32, i32
  }
  func.func @transform_5(%arg0: i32) -> (i32, i32) {
    %c0_i32 = arith.constant 0 : i32
    %c0_i32_0 = arith.constant 0 : i32
    %c0_i32_1 = arith.constant 0 : i32
    return %c0_i32, %c0_i32_0 : i32, i32
  }
  func.func @transform_6(%arg0: i32) -> i32 {
    %c0_i32 = arith.constant 0 : i32
    %c0_i32_0 = arith.constant 0 : i32
    return %c0_i32 : i32
  }
  func.func @transform_7(%arg0: i32) -> (i32, i32) {
    %c0_i32 = arith.constant 0 : i32
    %c0_i32_0 = arith.constant 0 : i32
    return %c0_i32, %arg0 : i32, i32
  }
}

</mosaic_0001>

<llo_original>
// kernel: tpu_custom_call.1
$region0: #{tpu_custom_call.1}
  #allocation0 [shape = 'u32[]', space=smem, size = 0x4, offset = 0x4, fixed_abs, tag = 'smem constant byte address 0x4 - core index']
  #allocation1 [shape = 'u32[144,128]{1,0:T(1,128)}', space=vmem, size = 0x12000, scoped, tag = 'internal scratch']
  #allocation2 [shape = 'f32[1]{0:T(128)S(6)}', space=smem, size = 0x200, scoped, tag = 'scoped memory for tpu_custom_call.1']
  %s0 = inlined_call_operand.vmem [shape: f32[256,16], index: 0, kind: input, shape index: {}]
  %s1 = inlined_call_operand.vmem [shape: f32[32,16], index: 1, kind: input, shape index: {}]
  %s2 = inlined_call_operand.vmem [shape: f32[32,1], index: 2, kind: input, shape index: {}]
  %s3 = inlined_call_operand.vmem [shape: f32[9,32,32], index: 3, kind: input, shape index: {}]
  %s4 = inlined_call_operand.vmem [shape: f32[9,32,1], index: 4, kind: input, shape index: {}]
  %s5 = inlined_call_operand.vmem [shape: f32[32,1], index: 5, kind: input, shape index: {}]
  %s6 = inlined_call_operand.<no memory space> [shape: f32[1], index: 6, kind: input, shape index: {}]
  %s7 = inlined_call_operand.hbm [shape: f32[1,256], index: 7, kind: output, shape index: {}]
  %s8 = sld [smem:[#allocation0]]
  $region38: #{tpu_custom_call.1} parent=0
    _
  %s10 = ssub.s32 1, %s8
  %s11 = scalar_select 0, %s10, %s8
  %12 = sst [smem:[#allocation2]] %s6
  $region1: #{tpu_custom_call.1} parent=0
    #allocation3 [shape = 'u8[1024]{0}', space=vmem, size = 0x400, scoped, tag = 'output window, operand 0, single buffered']
    #allocation4 [shape = 's32[1]{0}', space=sflag, size = 0x4, scoped, tag = 'scoped memory for tpu_custom_call.1']
    %13 = vsyncpa [#allocation4], 0
    // Predicated region
    $region2: #{tpu_custom_call.1} parent=1 // pred_check
      _
    $region3: #{tpu_custom_call.1} parent=1 // pred_check_branch
      %15 = sbr.rel (0) target = $region5
    $region4: #{tpu_custom_call.1} parent=1 // pred_region
      _
    $region5: #{tpu_custom_call.1} parent=1 // pred_fallthru
      _
    // Predicated region
    $region6: #{tpu_custom_call.1} parent=1 // pred_check
      _
    $region7: #{tpu_custom_call.1} parent=1 // pred_check_branch
      %17 = sbr.rel (0) target = $region9
    $region8: #{tpu_custom_call.1} parent=1 // pred_region
      _
    $region9: #{tpu_custom_call.1} parent=1 // pred_fallthru
      _
    // Predicated region
    $region10: #{tpu_custom_call.1} parent=1 // pred_check
      _
    $region11: #{tpu_custom_call.1} parent=1 // pred_check_branch
      %19 = sbr.rel (0) target = $region13
    $region12: #{tpu_custom_call.1} parent=1 // pred_region
      _
    $region13: #{tpu_custom_call.1} parent=1 // pred_fallthru
      _
    // Predicated region
    $region14: #{tpu_custom_call.1} parent=1 // pred_check
      _
    $region15: #{tpu_custom_call.1} parent=1 // pred_check_branch
      %21 = sbr.rel (0) target = $region17
    $region16: #{tpu_custom_call.1} parent=1 // pred_region
      _
    $region17: #{tpu_custom_call.1} parent=1 // pred_fallthru
      _
    // Predicated region
    $region18: #{tpu_custom_call.1} parent=1 // pred_check
      _
    $region19: #{tpu_custom_call.1} parent=1 // pred_check_branch
      %23 = sbr.rel (0) target = $region21
    $region20: #{tpu_custom_call.1} parent=1 // pred_region
      _
    $region21: #{tpu_custom_call.1} parent=1 // pred_fallthru
      _
    // Predicated region
    $region22: #{tpu_custom_call.1} parent=1 // pred_check
      _
    $region23: #{tpu_custom_call.1} parent=1 // pred_check_branch
      %25 = sbr.rel (0) target = $region25
    $region24: #{tpu_custom_call.1} parent=1 // pred_region
      _
    $region25: #{tpu_custom_call.1} parent=1 // pred_fallthru
      _
    // Predicated region
    $region26: #{tpu_custom_call.1} parent=1 // pred_check
      _
    $region27: #{tpu_custom_call.1} parent=1 // pred_check_branch
      %27 = sbr.rel (0) target = $region29
    $region28: #{tpu_custom_call.1} parent=1 // pred_region
      _
    $region29: #{tpu_custom_call.1} parent=1 // pred_fallthru
      _
    %v28 = vld [vmem:[%s0] sm:$0xff]
    %v29 = vld [vmem:[%s0 + $0x8] sm:$0xff]
    %v30 = vld [vmem:[%s0 + $0x10] sm:$0xff]
    %v31 = vld [vmem:[%s0 + $0x18] sm:$0xff]
    %v32 = vld [vmem:[%s0 + $0x20] sm:$0xff]
    %v33 = vld [vmem:[%s0 + $0x28] sm:$0xff]
    %v34 = vld [vmem:[%s0 + $0x30] sm:$0xff]
    %v35 = vld [vmem:[%s0 + $0x38] sm:$0xff]
    %v36 = vld [vmem:[%s0 + $0x40] sm:$0xff]
    %v37 = vld [vmem:[%s0 + $0x48] sm:$0xff]
    %v38 = vld [vmem:[%s0 + $0x50] sm:$0xff]
    %v39 = vld [vmem:[%s0 + $0x58] sm:$0xff]
    %v40 = vld [vmem:[%s0 + $0x60] sm:$0xff]
    %v41 = vld [vmem:[%s0 + $0x68] sm:$0xff]
    %v42 = vld [vmem:[%s0 + $0x70] sm:$0xff]
    %v43 = vld [vmem:[%s0 + $0x78] sm:$0xff]
    %v44 = vld [vmem:[%s0 + $0x80] sm:$0xff]
    %v45 = vld [vmem:[%s0 + $0x88] sm:$0xff]
    %v46 = vld [vmem:[%s0 + $0x90] sm:$0xff]
    %v47 = vld [vmem:[%s0 + $0x98] sm:$0xff]
    %v48 = vld [vmem:[%s0 + $0xa0] sm:$0xff]
    %v49 = vld [vmem:[%s0 + $0xa8] sm:$0xff]
    %v50 = vld [vmem:[%s0 + $0xb0] sm:$0xff]
    %v51 = vld [vmem:[%s0 + $0xb8] sm:$0xff]
    %v52 = vld [vmem:[%s0 + $0xc0] sm:$0xff]
    %v53 = vld [vmem:[%s0 + $0xc8] sm:$0xff]
    %v54 = vld [vmem:[%s0 + $0xd0] sm:$0xff]
    %v55 = vld [vmem:[%s0 + $0xd8] sm:$0xff]
    %v56 = vld [vmem:[%s0 + $0xe0] sm:$0xff]
    %v57 = vld [vmem:[%s0 + $0xe8] sm:$0xff]
    %v58 = vld [vmem:[%s0 + $0xf0] sm:$0xff]
    %v59 = vld [vmem:[%s0 + $0xf8] sm:$0xff]
    %v60 = vld [vmem:[%s1] sm:$0xff]
    %v61 = vld [vmem:[%s1 + $0x8] sm:$0xff]
    %v62 = vld [vmem:[%s1 + $0x10] sm:$0xff]
    %v63 = vld [vmem:[%s1 + $0x18] sm:$0xff]
    %v64 = vld [vmem:[%s2] sm:$0xff]
    %v65 = vld [vmem:[%s2 + $0x8] sm:$0xff]
    %v66 = vld [vmem:[%s2 + $0x10] sm:$0xff]
    %v67 = vld [vmem:[%s2 + $0x18] sm:$0xff]
    %69 = vset.pattern.permute.xlu0 0
    %70 = vperm.xlu0 %69, %v64
    %v71 = vpop.permute.xlu0 %70
    %74 = vset.pattern.permute.xlu0 0
    %75 = vperm.xlu0 %74, %v65
    %v76 = vpop.permute.xlu0 %75
    %79 = vset.pattern.permute.xlu0 0
    %80 = vperm.xlu0 %79, %v66
    %v81 = vpop.permute.xlu0 %80
    %84 = vset.pattern.permute.xlu0 0
    %85 = vperm.xlu0 %84, %v67
    %v86 = vpop.permute.xlu0 %85
    %vm88 = vcmask 130048
    %v90 = vsel %vm88, %v60, 0
    %v93 = vsel %vm88, %v61, 0
    %v96 = vsel %vm88, %v62, 0
    %v99 = vsel %vm88, %v63, 0
    %v102 = vsel %vm88, %v28, 0
    %v105 = vsel %vm88, %v29, 0
    %v108 = vsel %vm88, %v30, 0
    %v111 = vsel %vm88, %v31, 0
    %v114 = vsel %vm88, %v32, 0
    %v117 = vsel %vm88, %v33, 0
    %v120 = vsel %vm88, %v34, 0
    %v123 = vsel %vm88, %v35, 0
    %v126 = vsel %vm88, %v36, 0
    %v129 = vsel %vm88, %v37, 0
    %v132 = vsel %vm88, %v38, 0
    %v135 = vsel %vm88, %v39, 0
    %v138 = vsel %vm88, %v40, 0
    %v141 = vsel %vm88, %v41, 0
    %v144 = vsel %vm88, %v42, 0
    %v147 = vsel %vm88, %v43, 0
    %v150 = vsel %vm88, %v44, 0
    %v153 = vsel %vm88, %v45, 0
    %v156 = vsel %vm88, %v46, 0
    %v159 = vsel %vm88, %v47, 0
    %v162 = vsel %vm88, %v48, 0
    %v165 = vsel %vm88, %v49, 0
    %v168 = vsel %vm88, %v50, 0
    %v171 = vsel %vm88, %v51, 0
    %v174 = vsel %vm88, %v52, 0
    %v177 = vsel %vm88, %v53, 0
    %v180 = vsel %vm88, %v54, 0
    %v183 = vsel %vm88, %v55, 0
    %v186 = vsel %vm88, %v56, 0
    %v189 = vsel %vm88, %v57, 0
    %v192 = vsel %vm88, %v58, 0
    %v195 = vsel %vm88, %v59, 0
    %197 = vmatprep.subr.mxu0 0.0
    %198 = vmatpush1.xpose.msra.mxu0 %v147
    %199 = vmatprep.subr.mxu0 0.0
    %200 = vmatpush1.xpose.msra.mxu0 %v144
    %201 = vmatprep.subr.mxu0 0.0
    %202 = vmatpush1.xpose.msra.mxu0 %v141
    %203 = vmatprep.subr.mxu0 0.0
    %204 = vmatpush1.xpose.msra.mxu0 %v138
    %205 = vmatprep.subr.mxu0 0.0
    %206 = vmatpush1.xpose.msra.mxu0 %v135
    %207 = vmatprep.subr.mxu0 0.0
    %208 = vmatpush1.xpose.msra.mxu0 %v132
    %209 = vmatprep.subr.mxu0 0.0
    %210 = vmatpush1.xpose.msra.mxu0 %v129
    %211 = vmatprep.subr.mxu0 0.0
    %212 = vmatpush1.xpose.msra.mxu0 %v126
    %213 = vmatprep.subr.mxu0 0.0
    %214 = vmatpush1.xpose.msra.mxu0 %v123
    %215 = vmatprep.subr.mxu0 0.0
    %216 = vmatpush1.xpose.msra.mxu0 %v120
    %217 = vmatprep.subr.mxu0 0.0
    %218 = vmatpush1.xpose.msra.mxu0 %v117
    %219 = vmatprep.subr.mxu0 0.0
    %220 = vmatpush1.xpose.msra.mxu0 %v114
    %221 = vmatprep.subr.mxu0 0.0
    %222 = vmatpush1.xpose.msra.mxu0 %v111
    %223 = vmatprep.subr.mxu0 0.0
    %224 = vmatpush1.xpose.msra.mxu0 %v108
    %225 = vmatprep.subr.mxu0 0.0
    %226 = vmatpush1.xpose.msra.mxu0 %v105
    %227 = vmatprep.subr.mxu0 0.0
    %228 = vmatpush1.xpose.msra.mxu0 %v102
    %229 = vmatprep.subr.mxu0 0.0
    %230 = vmatpush2.xpose.msra.mxu0 %v195
    %231 = vmatprep.subr.mxu0 0.0
    %232 = vmatpush2.xpose.msra.mxu0 %v192
    %233 = vmatprep.subr.mxu0 0.0
    %234 = vmatpush2.xpose.msra.mxu0 %v189
    %235 = vmatprep.subr.mxu0 0.0
    %236 = vmatpush2.xpose.msra.mxu0 %v186
    %237 = vmatprep.subr.mxu0 0.0
    %238 = vmatpush2.xpose.msra.mxu0 %v183
    %239 = vmatprep.subr.mxu0 0.0
    %240 = vmatpush2.xpose.msra.mxu0 %v180
    %241 = vmatprep.subr.mxu0 0.0
    %242 = vmatpush2.xpose.msra.mxu0 %v177
    %243 = vmatprep.subr.mxu0 0.0
    %244 = vmatpush2.xpose.msra.mxu0 %v174
    %245 = vmatprep.subr.mxu0 0.0
    %246 = vmatpush2.xpose.msra.mxu0 %v171
    %247 = vmatprep.subr.mxu0 0.0
    %248 = vmatpush2.xpose.msra.mxu0 %v168
    %249 = vmatprep.subr.mxu0 0.0
    %250 = vmatpush2.xpose.msra.mxu0 %v165
    %251 = vmatprep.subr.mxu0 0.0
    %252 = vmatpush2.xpose.msra.mxu0 %v162
    %253 = vmatprep.subr.mxu0 0.0
    %254 = vmatpush2.xpose.msra.mxu0 %v159
    %255 = vmatprep.subr.mxu0 0.0
    %256 = vmatpush2.xpose.msra.mxu0 %v156
    %257 = vmatprep.subr.mxu0 0.0
    %258 = vmatpush2.xpose.msra.mxu0 %v153
    %259 = vmatprep.subr.mxu0 0.0
    %260 = vmatpush2.xpose.msra.mxu0 %v150
    %261 = vmatprep.mubr.f32.mxu0 0.0
    %262 = vmatmul.mubr.f32.gmra.mxu0 %v90
    %v263 = vpop.f32.mrf.mxu0
    %v264 = vadd.f32 %v71, %v263
    %v265 = vpop.f32.mrf.mxu0
    %v266 = vadd.f32 %v71, %v265
    %267 = vmatprep.mubr.f32.mxu0 0.0
    %268 = vmatmul.mubr.f32.gmra.mxu0 %v93
    %v269 = vpop.f32.mrf.mxu0
    %v270 = vadd.f32 %v76, %v269
    %v271 = vpop.f32.mrf.mxu0
    %v272 = vadd.f32 %v76, %v271
    %273 = vmatprep.mubr.f32.mxu0 0.0
    %274 = vmatmul.mubr.f32.gmra.mxu0 %v96
    %v275 = vpop.f32.mrf.mxu0
    %v276 = vadd.f32 %v81, %v275
    %v277 = vpop.f32.mrf.mxu0
    %v278 = vadd.f32 %v81, %v277
    %279 = vmatprep.mubr.f32.mxu0 0.0
    %280 = vmatmul.mubr.f32.gmra.mxu0 %v99
    %v281 = vpop.f32.mrf.mxu0
    %v282 = vadd.f32 %v86, %v281
    %v283 = vpop.f32.mrf.mxu0
    %v284 = vadd.f32 %v86, %v283
    %285 = vdwg.mxu0
    %v286 = vmax.f32 %v264, 0.0
    %v287 = vmax.f32 %v266, 0.0
    %v288 = vmax.f32 %v270, 0.0
    %v289 = vmax.f32 %v272, 0.0
    %v290 = vmax.f32 %v276, 0.0
    %v291 = vmax.f32 %v278, 0.0
    %v292 = vmax.f32 %v282, 0.0
    %v293 = vmax.f32 %v284, 0.0
    %v294 = vld [vmem:[%s3] sm:$0xff]
    %v295 = vld [vmem:[%s3 + $0x8] sm:$0xff]
    %v296 = vld [vmem:[%s3 + $0x10] sm:$0xff]
    %v297 = vld [vmem:[%s3 + $0x18] sm:$0xff]
    %v298 = vld [vmem:[%s4] sm:$0xff]
    %v299 = vld [vmem:[%s4 + $0x8] sm:$0xff]
    %v300 = vld [vmem:[%s4 + $0x10] sm:$0xff]
    %v301 = vld [vmem:[%s4 + $0x18] sm:$0xff]
    %303 = vset.pattern.permute.xlu0 0
    %304 = vperm.xlu0 %303, %v298
    %v305 = vpop.permute.xlu0 %304
    %308 = vset.pattern.permute.xlu0 0
    %309 = vperm.xlu0 %308, %v299
    %v310 = vpop.permute.xlu0 %309
    %313 = vset.pattern.permute.xlu0 0
    %314 = vperm.xlu0 %313, %v300
    %v315 = vpop.permute.xlu0 %314
    %318 = vset.pattern.permute.xlu0 0
    %319 = vperm.xlu0 %318, %v301
    %v320 = vpop.permute.xlu0 %319
    %vm322 = vcmask 261120
    %v324 = vsel %vm322, %v294, 0
    %v327 = vsel %vm322, %v295, 0
    %v330 = vsel %vm322, %v296, 0
    %v333 = vsel %vm322, %v297, 0
    %335 = vmatprep.subr.mxu0 0.0
    %336 = vmatpush1.msra.mxu0 0.0
    %337 = vmatprep.subr.mxu0 0.0
    %338 = vmatpush1.msra.mxu0 0.0
    %339 = vmatprep.subr.mxu0 0.0
    %340 = vmatpush1.msra.mxu0 0.0
    %341 = vmatprep.subr.mxu0 0.0
    %342 = vmatpush1.msra.mxu0 0.0
    %343 = vmatprep.subr.mxu0 0.0
    %344 = vmatpush1.msra.mxu0 0.0
    %345 = vmatprep.subr.mxu0 0.0
    %346 = vmatpush1.msra.mxu0 0.0
    %347 = vmatprep.subr.mxu0 0.0
    %348 = vmatpush1.msra.mxu0 0.0
    %349 = vmatprep.subr.mxu0 0.0
    %350 = vmatpush1.msra.mxu0 0.0
    %351 = vmatprep.subr.mxu0 0.0
    %352 = vmatpush1.msra.mxu0 0.0
    %353 = vmatprep.subr.mxu0 0.0
    %354 = vmatpush1.msra.mxu0 0.0
    %355 = vmatprep.subr.mxu0 0.0
    %356 = vmatpush1.msra.mxu0 0.0
    %357 = vmatprep.subr.mxu0 0.0
    %358 = vmatpush1.msra.mxu0 0.0
    %359 = vmatprep.subr.mxu0 %v293
    %360 = vmatpush1.msra.mxu0 %v292
    %361 = vmatprep.subr.mxu0 %v291
    %362 = vmatpush1.msra.mxu0 %v290
    %363 = vmatprep.subr.mxu0 %v289
    %364 = vmatpush1.msra.mxu0 %v288
    %365 = vmatprep.subr.mxu0 %v287
    %366 = vmatpush1.msra.mxu0 %v286
    %367 = vmatprep.subr.mxu0 0.0
    %368 = vmatpush2.msra.mxu0 0.0
    %369 = vmatprep.subr.mxu0 0.0
    %370 = vmatpush2.msra.mxu0 0.0
    %371 = vmatprep.subr.mxu0 0.0
    %372 = vmatpush2.msra.mxu0 0.0
    %373 = vmatprep.subr.mxu0 0.0
    %374 = vmatpush2.msra.mxu0 0.0
    %375 = vmatprep.subr.mxu0 0.0
    %376 = vmatpush2.msra.mxu0 0.0
    %377 = vmatprep.subr.mxu0 0.0
    %378 = vmatpush2.msra.mxu0 0.0
    %379 = vmatprep.subr.mxu0 0.0
    %380 = vmatpush2.msra.mxu0 0.0
    %381 = vmatprep.subr.mxu0 0.0
    %382 = vmatpush2.msra.mxu0 0.0
    %383 = vmatprep.subr.mxu0 0.0
    %384 = vmatpush2.msra.mxu0 0.0
    %385 = vmatprep.subr.mxu0 0.0
    %386 = vmatpush2.msra.mxu0 0.0
    %387 = vmatprep.subr.mxu0 0.0
    %388 = vmatpush2.msra.mxu0 0.0
    %389 = vmatprep.subr.mxu0 0.0
    %390 = vmatpush2.msra.mxu0 0.0
    %391 = vmatprep.subr.mxu0 0.0
    %392 = vmatpush2.msra.mxu0 0.0
    %393 = vmatprep.subr.mxu0 0.0
    %394 = vmatpush2.msra.mxu0 0.0
    %395 = vmatprep.subr.mxu0 0.0
    %396 = vmatpush2.msra.mxu0 0.0
    %397 = vmatprep.subr.mxu0 0.0
    %398 = vmatpush2.msra.mxu0 0.0
    %399 = vmatprep.mubr.f32.mxu0 0.0
    %400 = vmatmul.mubr.f32.gmra.mxu0 %v324
    %v401 = vpop.f32.mrf.mxu0
    %v402 = vadd.f32 %v305, %v401
    %v403 = vpop.f32.mrf.mxu0
    %v404 = vadd.f32 %v305, %v403
    %405 = vmatprep.mubr.f32.mxu0 0.0
    %406 = vmatmul.mubr.f32.gmra.mxu0 %v327
    %v407 = vpop.f32.mrf.mxu0
    %v408 = vadd.f32 %v310, %v407
    %v409 = vpop.f32.mrf.mxu0
    %v410 = vadd.f32 %v310, %v409
    %411 = vmatprep.mubr.f32.mxu0 0.0
    %412 = vmatmul.mubr.f32.gmra.mxu0 %v330
    %v413 = vpop.f32.mrf.mxu0
    %v414 = vadd.f32 %v315, %v413
    %v415 = vpop.f32.mrf.mxu0
    %v416 = vadd.f32 %v315, %v415
    %417 = vmatprep.mubr.f32.mxu0 0.0
    %418 = vmatmul.mubr.f32.gmra.mxu0 %v333
    %v419 = vpop.f32.mrf.mxu0
    %v420 = vadd.f32 %v320, %v419
    %v421 = vpop.f32.mrf.mxu0
    %v422 = vadd.f32 %v320, %v421
    %423 = vdwg.mxu0
    %v424 = vmax.f32 %v402, 0.0
    %v425 = vmax.f32 %v404, 0.0
    %v426 = vmax.f32 %v408, 0.0
    %v427 = vmax.f32 %v410, 0.0
    %v428 = vmax.f32 %v414, 0.0
    %v429 = vmax.f32 %v416, 0.0
    %v430 = vmax.f32 %v420, 0.0
    %v431 = vmax.f32 %v422, 0.0
    %s432 = scalar_lea.vmem %s3, 32
    %v433 = vld [vmem:[%s432] sm:$0xff]
    %v434 = vld [vmem:[%s432 + $0x8] sm:$0xff]
    %v435 = vld [vmem:[%s432 + $0x10] sm:$0xff]
    %v436 = vld [vmem:[%s432 + $0x18] sm:$0xff]
    %s437 = scalar_lea.vmem %s4, 32
    %v438 = vld [vmem:[%s437] sm:$0xff]
    %v439 = vld [vmem:[%s437 + $0x8] sm:$0xff]
    %v440 = vld [vmem:[%s437 + $0x10] sm:$0xff]
    %v441 = vld [vmem:[%s437 + $0x18] sm:$0xff]
    %443 = vset.pattern.permute.xlu0 0
    %444 = vperm.xlu0 %443, %v438
    %v445 = vpop.permute.xlu0 %444
    %448 = vset.pattern.permute.xlu0 0
    %449 = vperm.xlu0 %448, %v439
    %v450 = vpop.permute.xlu0 %449
    %453 = vset.pattern.permute.xlu0 0
    %454 = vperm.xlu0 %453, %v440
    %v455 = vpop.permute.xlu0 %454
    %458 = vset.pattern.permute.xlu0 0
    %459 = vperm.xlu0 %458, %v441
    %v460 = vpop.permute.xlu0 %459
    %v463 = vsel %vm322, %v433, 0
    %v466 = vsel %vm322, %v434, 0
    %v469 = vsel %vm322, %v435, 0
    %v472 = vsel %vm322, %v436, 0
    %474 = vmatprep.subr.mxu0 0.0
    %475 = vmatpush1.msra.mxu0 0.0
    %476 = vmatprep.subr.mxu0 0.0
    %477 = vmatpush1.msra.mxu0 0.0
    %478 = vmatprep.subr.mxu0 0.0
    %479 = vmatpush1.msra.mxu0 0.0
    %480 = vmatprep.subr.mxu0 0.0
    %481 = vmatpush1.msra.mxu0 0.0
    %482 = vmatprep.subr.mxu0 0.0
    %483 = vmatpush1.msra.mxu0 0.0
    %484 = vmatprep.subr.mxu0 0.0
    %485 = vmatpush1.msra.mxu0 0.0
    %486 = vmatprep.subr.mxu0 0.0
    %487 = vmatpush1.msra.mxu0 0.0
    %488 = vmatprep.subr.mxu0 0.0
    %489 = vmatpush1.msra.mxu0 0.0
    %490 = vmatprep.subr.mxu0 0.0
    %491 = vmatpush1.msra.mxu0 0.0
    %492 = vmatprep.subr.mxu0 0.0
    %493 = vmatpush1.msra.mxu0 0.0
    %494 = vmatprep.subr.mxu0 0.0
    %495 = vmatpush1.msra.mxu0 0.0
    %496 = vmatprep.subr.mxu0 0.0
    %497 = vmatpush1.msra.mxu0 0.0
    %498 = vmatprep.subr.mxu0 %v431
    %499 = vmatpush1.msra.mxu0 %v430
    %500 = vmatprep.subr.mxu0 %v429
    %501 = vmatpush1.msra.mxu0 %v428
    %502 = vmatprep.subr.mxu0 %v427
    %503 = vmatpush1.msra.mxu0 %v426
    %504 = vmatprep.subr.mxu0 %v425
    %505 = vmatpush1.msra.mxu0 %v424
    %506 = vmatprep.subr.mxu0 0.0
    %507 = vmatpush2.msra.mxu0 0.0
    %508 = vmatprep.subr.mxu0 0.0
    %509 = vmatpush2.msra.mxu0 0.0
    %510 = vmatprep.subr.mxu0 0.0
    %511 = vmatpush2.msra.mxu0 0.0
    %512 = vmatprep.subr.mxu0 0.0
    %513 = vmatpush2.msra.mxu0 0.0
    %514 = vmatprep.subr.mxu0 0.0
    %515 = vmatpush2.msra.mxu0 0.0
    %516 = vmatprep.subr.mxu0 0.0
    %517 = vmatpush2.msra.mxu0 0.0
    %518 = vmatprep.subr.mxu0 0.0
    %519 = vmatpush2.msra.mxu0 0.0
    %520 = vmatprep.subr.mxu0 0.0
    %521 = vmatpush2.msra.mxu0 0.0
    %522 = vmatprep.subr.mxu0 0.0
    %523 = vmatpush2.msra.mxu0 0.0
    %524 = vmatprep.subr.mxu0 0.0
    %525 = vmatpush2.msra.mxu0 0.0
    %526 = vmatprep.subr.mxu0 0.0
    %527 = vmatpush2.msra.mxu0 0.0
    %528 = vmatprep.subr.mxu0 0.0
    %529 = vmatpush2.msra.mxu0 0.0
    %530 = vmatprep.subr.mxu0 0.0
    %531 = vmatpush2.msra.mxu0 0.0
    %532 = vmatprep.subr.mxu0 0.0
    %533 = vmatpush2.msra.mxu0 0.0
    %534 = vmatprep.subr.mxu0 0.0
    %535 = vmatpush2.msra.mxu0 0.0
    %536 = vmatprep.subr.mxu0 0.0
    %537 = vmatpush2.msra.mxu0 0.0
    %538 = vmatprep.mubr.f32.mxu0 0.0
    %539 = vmatmul.mubr.f32.gmra.mxu0 %v463
    %v540 = vpop.f32.mrf.mxu0
    %v541 = vadd.f32 %v445, %v540
    %v542 = vpop.f32.mrf.mxu0
    %v543 = vadd.f32 %v445, %v542
    %544 = vmatprep.mubr.f32.mxu0 0.0
    %545 = vmatmul.mubr.f32.gmra.mxu0 %v466
    %v546 = vpop.f32.mrf.mxu0
    %v547 = vadd.f32 %v450, %v546
    %v548 = vpop.f32.mrf.mxu0
    %v549 = vadd.f32 %v450, %v548
    %550 = vmatprep.mubr.f32.mxu0 0.0
    %551 = vmatmul.mubr.f32.gmra.mxu0 %v469
    %v552 = vpop.f32.mrf.mxu0
    %v553 = vadd.f32 %v455, %v552
    %v554 = vpop.f32.mrf.mxu0
    %v555 = vadd.f32 %v455, %v554
    %556 = vmatprep.mubr.f32.mxu0 0.0
    %557 = vmatmul.mubr.f32.gmra.mxu0 %v472
    %v558 = vpop.f32.mrf.mxu0
    %v559 = vadd.f32 %v460, %v558
    %v560 = vpop.f32.mrf.mxu0
    %v561 = vadd.f32 %v460, %v560
    %562 = vdwg.mxu0
    %v563 = vmax.f32 %v541, 0.0
    %v564 = vmax.f32 %v543, 0.0
    %v565 = vmax.f32 %v547, 0.0
    %v566 = vmax.f32 %v549, 0.0
    %v567 = vmax.f32 %v553, 0.0
    %v568 = vmax.f32 %v555, 0.0
    %v569 = vmax.f32 %v559, 0.0
    %v570 = vmax.f32 %v561, 0.0
    %s571 = scalar_lea.vmem %s3, 64
    %v572 = vld [vmem:[%s571] sm:$0xff]
    %v573 = vld [vmem:[%s571 + $0x8] sm:$0xff]
    %v574 = vld [vmem:[%s571 + $0x10] sm:$0xff]
    %v575 = vld [vmem:[%s571 + $0x18] sm:$0xff]
    %s576 = scalar_lea.vmem %s4, 64
    %v577 = vld [vmem:[%s576] sm:$0xff]
    %v578 = vld [vmem:[%s576 + $0x8] sm:$0xff]
    %v579 = vld [vmem:[%s576 + $0x10] sm:$0xff]
    %v580 = vld [vmem:[%s576 + $0x18] sm:$0xff]
    %582 = vset.pattern.permute.xlu0 0
    %583 = vperm.xlu0 %582, %v577
    %v584 = vpop.permute.xlu0 %583
    %587 = vset.pattern.permute.xlu0 0
    %588 = vperm.xlu0 %587, %v578
    %v589 = vpop.permute.xlu0 %588
    %592 = vset.pattern.permute.xlu0 0
    %593 = vperm.xlu0 %592, %v579
    %v594 = vpop.permute.xlu0 %593
    %597 = vset.pattern.permute.xlu0 0
    %598 = vperm.xlu0 %597, %v580
    %v599 = vpop.permute.xlu0 %598
    %v602 = vsel %vm322, %v572, 0
    %v605 = vsel %vm322, %v573, 0
    %v608 = vsel %vm322, %v574, 0
    %v611 = vsel %vm322, %v575, 0
    %613 = vmatprep.subr.mxu0 0.0
    %614 = vmatpush1.msra.mxu0 0.0
    %615 = vmatprep.subr.mxu0 0.0
    %616 = vmatpush1.msra.mxu0 0.0
    %617 = vmatprep.subr.mxu0 0.0
    %618 = vmatpush1.msra.mxu0 0.0
    %619 = vmatprep.subr.mxu0 0.0
    %620 = vmatpush1.msra.mxu0 0.0
    %621 = vmatprep.subr.mxu0 0.0
    %622 = vmatpush1.msra.mxu0 0.0
    %623 = vmatprep.subr.mxu0 0.0
    %624 = vmatpush1.msra.mxu0 0.0
    %625 = vmatprep.subr.mxu0 0.0
    %626 = vmatpush1.msra.mxu0 0.0
    %627 = vmatprep.subr.mxu0 0.0
    %628 = vmatpush1.msra.mxu0 0.0
    %629 = vmatprep.subr.mxu0 0.0
    %630 = vmatpush1.msra.mxu0 0.0
    %631 = vmatprep.subr.mxu0 0.0
    %632 = vmatpush1.msra.mxu0 0.0
    %633 = vmatprep.subr.mxu0 0.0
    %634 = vmatpush1.msra.mxu0 0.0
    %635 = vmatprep.subr.mxu0 0.0
    %636 = vmatpush1.msra.mxu0 0.0
    %637 = vmatprep.subr.mxu0 %v570
    %638 = vmatpush1.msra.mxu0 %v569
    %639 = vmatprep.subr.mxu0 %v568
    %640 = vmatpush1.msra.mxu0 %v567
    %641 = vmatprep.subr.mxu0 %v566
    %642 = vmatpush1.msra.mxu0 %v565
    %643 = vmatprep.subr.mxu0 %v564
    %644 = vmatpush1.msra.mxu0 %v563
    %645 = vmatprep.subr.mxu0 0.0
    %646 = vmatpush2.msra.mxu0 0.0
    %647 = vmatprep.subr.mxu0 0.0
    %648 = vmatpush2.msra.mxu0 0.0
    %649 = vmatprep.subr.mxu0 0.0
    %650 = vmatpush2.msra.mxu0 0.0
    %651 = vmatprep.subr.mxu0 0.0
    %652 = vmatpush2.msra.mxu0 0.0
    %653 = vmatprep.subr.mxu0 0.0
    %654 = vmatpush2.msra.mxu0 0.0
    %655 = vmatprep.subr.mxu0 0.0
    %656 = vmatpush2.msra.mxu0 0.0
    %657 = vmatprep.subr.mxu0 0.0
    %658 = vmatpush2.msra.mxu0 0.0
    %659 = vmatprep.subr.mxu0 0.0
    %660 = vmatpush2.msra.mxu0 0.0
    %661 = vmatprep.subr.mxu0 0.0
    %662 = vmatpush2.msra.mxu0 0.0
    %663 = vmatprep.subr.mxu0 0.0
    %664 = vmatpush2.msra.mxu0 0.0
    %665 = vmatprep.subr.mxu0 0.0
    %666 = vmatpush2.msra.mxu0 0.0
    %667 = vmatprep.subr.mxu0 0.0
    %668 = vmatpush2.msra.mxu0 0.0
    %669 = vmatprep.subr.mxu0 0.0
    %670 = vmatpush2.msra.mxu0 0.0
    %671 = vmatprep.subr.mxu0 0.0
    %672 = vmatpush2.msra.mxu0 0.0
    %673 = vmatprep.subr.mxu0 0.0
    %674 = vmatpush2.msra.mxu0 0.0
    %675 = vmatprep.subr.mxu0 0.0
    %676 = vmatpush2.msra.mxu0 0.0
    %677 = vmatprep.mubr.f32.mxu0 0.0
    %678 = vmatmul.mubr.f32.gmra.mxu0 %v602
    %v679 = vpop.f32.mrf.mxu0
    %v680 = vadd.f32 %v584, %v679
    %v681 = vpop.f32.mrf.mxu0
    %v682 = vadd.f32 %v584, %v681
    %683 = vmatprep.mubr.f32.mxu0 0.0
    %684 = vmatmul.mubr.f32.gmra.mxu0 %v605
    %v685 = vpop.f32.mrf.mxu0
    %v686 = vadd.f32 %v589, %v685
    %v687 = vpop.f32.mrf.mxu0
    %v688 = vadd.f32 %v589, %v687
    %689 = vmatprep.mubr.f32.mxu0 0.0
    %690 = vmatmul.mubr.f32.gmra.mxu0 %v608
    %v691 = vpop.f32.mrf.mxu0
    %v692 = vadd.f32 %v594, %v691
    %v693 = vpop.f32.mrf.mxu0
    %v694 = vadd.f32 %v594, %v693
    %695 = vmatprep.mubr.f32.mxu0 0.0
    %696 = vmatmul.mubr.f32.gmra.mxu0 %v611
    %v697 = vpop.f32.mrf.mxu0
    %v698 = vadd.f32 %v599, %v697
    %v699 = vpop.f32.mrf.mxu0
    %v700 = vadd.f32 %v599, %v699
    %701 = vdwg.mxu0
    %v702 = vmax.f32 %v680, 0.0
    %v703 = vmax.f32 %v682, 0.0
    %v704 = vmax.f32 %v686, 0.0
    %v705 = vmax.f32 %v688, 0.0
    %v706 = vmax.f32 %v692, 0.0
    %v707 = vmax.f32 %v694, 0.0
    %v708 = vmax.f32 %v698, 0.0
    %v709 = vmax.f32 %v700, 0.0
    %s710 = scalar_lea.vmem %s3, 96
    %v711 = vld [vmem:[%s710] sm:$0xff]
    %v712 = vld [vmem:[%s710 + $0x8] sm:$0xff]
    %v713 = vld [vmem:[%s710 + $0x10] sm:$0xff]
    %v714 = vld [vmem:[%s710 + $0x18] sm:$0xff]
    %s715 = scalar_lea.vmem %s4, 96
    %v716 = vld [vmem:[%s715] sm:$0xff]
    %v717 = vld [vmem:[%s715 + $0x8] sm:$0xff]
    %v718 = vld [vmem:[%s715 + $0x10] sm:$0xff]
    %v719 = vld [vmem:[%s715 + $0x18] sm:$0xff]
    %721 = vset.pattern.permute.xlu0 0
    %722 = vperm.xlu0 %721, %v716
    %v723 = vpop.permute.xlu0 %722
    %726 = vset.pattern.permute.xlu0 0
    %727 = vperm.xlu0 %726, %v717
    %v728 = vpop.permute.xlu0 %727
    %731 = vset.pattern.permute.xlu0 0
    %732 = vperm.xlu0 %731, %v718
    %v733 = vpop.permute.xlu0 %732
    %736 = vset.pattern.permute.xlu0 0
    %737 = vperm.xlu0 %736, %v719
    %v738 = vpop.permute.xlu0 %737
    %v741 = vsel %vm322, %v711, 0
    %v744 = vsel %vm322, %v712, 0
    %v747 = vsel %vm322, %v713, 0
    %v750 = vsel %vm322, %v714, 0
    %752 = vmatprep.subr.mxu0 0.0
    %753 = vmatpush1.msra.mxu0 0.0
    %754 = vmatprep.subr.mxu0 0.0
    %755 = vmatpush1.msra.mxu0 0.0
    %756 = vmatprep.subr.mxu0 0.0
    %757 = vmatpush1.msra.mxu0 0.0
    %758 = vmatprep.subr.mxu0 0.0
    %759 = vmatpush1.msra.mxu0 0.0
    %760 = vmatprep.subr.mxu0 0.0
    %761 = vmatpush1.msra.mxu0 0.0
    %762 = vmatprep.subr.mxu0 0.0
    %763 = vmatpush1.msra.mxu0 0.0
    %764 = vmatprep.subr.mxu0 0.0
    %765 = vmatpush1.msra.mxu0 0.0
    %766 = vmatprep.subr.mxu0 0.0
    %767 = vmatpush1.msra.mxu0 0.0
    %768 = vmatprep.subr.mxu0 0.0
    %769 = vmatpush1.msra.mxu0 0.0
    %770 = vmatprep.subr.mxu0 0.0
    %771 = vmatpush1.msra.mxu0 0.0
    %772 = vmatprep.subr.mxu0 0.0
    %773 = vmatpush1.msra.mxu0 0.0
    %774 = vmatprep.subr.mxu0 0.0
    %775 = vmatpush1.msra.mxu0 0.0
    %776 = vmatprep.subr.mxu0 %v709
    %777 = vmatpush1.msra.mxu0 %v708
    %778 = vmatprep.subr.mxu0 %v707
    %779 = vmatpush1.msra.mxu0 %v706
    %780 = vmatprep.subr.mxu0 %v705
    %781 = vmatpush1.msra.mxu0 %v704
    %782 = vmatprep.subr.mxu0 %v703
    %783 = vmatpush1.msra.mxu0 %v702
    %784 = vmatprep.subr.mxu0 0.0
    %785 = vmatpush2.msra.mxu0 0.0
    %786 = vmatprep.subr.mxu0 0.0
    %787 = vmatpush2.msra.mxu0 0.0
    %788 = vmatprep.subr.mxu0 0.0
    %789 = vmatpush2.msra.mxu0 0.0
    %790 = vmatprep.subr.mxu0 0.0
    %791 = vmatpush2.msra.mxu0 0.0
    %792 = vmatprep.subr.mxu0 0.0
    %793 = vmatpush2.msra.mxu0 0.0
    %794 = vmatprep.subr.mxu0 0.0
    %795 = vmatpush2.msra.mxu0 0.0
    %796 = vmatprep.subr.mxu0 0.0
    %797 = vmatpush2.msra.mxu0 0.0
    %798 = vmatprep.subr.mxu0 0.0
    %799 = vmatpush2.msra.mxu0 0.0
    %800 = vmatprep.subr.mxu0 0.0
    %801 = vmatpush2.msra.mxu0 0.0
    %802 = vmatprep.subr.mxu0 0.0
    %803 = vmatpush2.msra.mxu0 0.0
    %804 = vmatprep.subr.mxu0 0.0
    %805 = vmatpush2.msra.mxu0 0.0
    %806 = vmatprep.subr.mxu0 0.0
    %807 = vmatpush2.msra.mxu0 0.0
    %808 = vmatprep.subr.mxu0 0.0
    %809 = vmatpush2.msra.mxu0 0.0
    %810 = vmatprep.subr.mxu0 0.0
    %811 = vmatpush2.msra.mxu0 0.0
    %812 = vmatprep.subr.mxu0 0.0
    %813 = vmatpush2.msra.mxu0 0.0
    %814 = vmatprep.subr.mxu0 0.0
    %815 = vmatpush2.msra.mxu0 0.0
    %816 = vmatprep.mubr.f32.mxu0 0.0
    %817 = vmatmul.mubr.f32.gmra.mxu0 %v741
    %v818 = vpop.f32.mrf.mxu0
    %v819 = vadd.f32 %v723, %v818
    %v820 = vpop.f32.mrf.mxu0
    %v821 = vadd.f32 %v723, %v820
    %822 = vmatprep.mubr.f32.mxu0 0.0
    %823 = vmatmul.mubr.f32.gmra.mxu0 %v744
    %v824 = vpop.f32.mrf.mxu0
    %v825 = vadd.f32 %v728, %v824
    %v826 = vpop.f32.mrf.mxu0
    %v827 = vadd.f32 %v728, %v826
    %828 = vmatprep.mubr.f32.mxu0 0.0
    %829 = vmatmul.mubr.f32.gmra.mxu0 %v747
    %v830 = vpop.f32.mrf.mxu0
    %v831 = vadd.f32 %v733, %v830
    %v832 = vpop.f32.mrf.mxu0
    %v833 = vadd.f32 %v733, %v832
    %834 = vmatprep.mubr.f32.mxu0 0.0
    %835 = vmatmul.mubr.f32.gmra.mxu0 %v750
    %v836 = vpop.f32.mrf.mxu0
    %v837 = vadd.f32 %v738, %v836
    %v838 = vpop.f32.mrf.mxu0
    %v839 = vadd.f32 %v738, %v838
    %840 = vdwg.mxu0
    %v841 = vmax.f32 %v819, 0.0
    %v842 = vmax.f32 %v821, 0.0
    %v843 = vmax.f32 %v825, 0.0
    %v844 = vmax.f32 %v827, 0.0
    %v845 = vmax.f32 %v831, 0.0
    %v846 = vmax.f32 %v833, 0.0
    %v847 = vmax.f32 %v837, 0.0
    %v848 = vmax.f32 %v839, 0.0
    %s849 = scalar_lea.vmem %s3, 128
    %v850 = vld [vmem:[%s849] sm:$0xff]
    %v851 = vld [vmem:[%s849 + $0x8] sm:$0xff]
    %v852 = vld [vmem:[%s849 + $0x10] sm:$0xff]
    %v853 = vld [vmem:[%s849 + $0x18] sm:$0xff]
    %s854 = scalar_lea.vmem %s4, 128
    %v855 = vld [vmem:[%s854] sm:$0xff]
    %v856 = vld [vmem:[%s854 + $0x8] sm:$0xff]
    %v857 = vld [vmem:[%s854 + $0x10] sm:$0xff]
    %v858 = vld [vmem:[%s854 + $0x18] sm:$0xff]
    %860 = vset.pattern.permute.xlu0 0
    %861 = vperm.xlu0 %860, %v855
    %v862 = vpop.permute.xlu0 %861
    %865 = vset.pattern.permute.xlu0 0
    %866 = vperm.xlu0 %865, %v856
    %v867 = vpop.permute.xlu0 %866
    %870 = vset.pattern.permute.xlu0 0
    %871 = vperm.xlu0 %870, %v857
    %v872 = vpop.permute.xlu0 %871
    %875 = vset.pattern.permute.xlu0 0
    %876 = vperm.xlu0 %875, %v858
    %v877 = vpop.permute.xlu0 %876
    %v880 = vsel %vm322, %v850, 0
    %v883 = vsel %vm322, %v851, 0
    %v886 = vsel %vm322, %v852, 0
    %v889 = vsel %vm322, %v853, 0
    %891 = vmatprep.subr.mxu0 0.0
    %892 = vmatpush1.msra.mxu0 0.0
    %893 = vmatprep.subr.mxu0 0.0
    %894 = vmatpush1.msra.mxu0 0.0
    %895 = vmatprep.subr.mxu0 0.0
    %896 = vmatpush1.msra.mxu0 0.0
    %897 = vmatprep.subr.mxu0 0.0
    %898 = vmatpush1.msra.mxu0 0.0
    %899 = vmatprep.subr.mxu0 0.0
    %900 = vmatpush1.msra.mxu0 0.0
    %901 = vmatprep.subr.mxu0 0.0
    %902 = vmatpush1.msra.mxu0 0.0
    %903 = vmatprep.subr.mxu0 0.0
    %904 = vmatpush1.msra.mxu0 0.0
    %905 = vmatprep.subr.mxu0 0.0
    %906 = vmatpush1.msra.mxu0 0.0
    %907 = vmatprep.subr.mxu0 0.0
    %908 = vmatpush1.msra.mxu0 0.0
    %909 = vmatprep.subr.mxu0 0.0
    %910 = vmatpush1.msra.mxu0 0.0
    %911 = vmatprep.subr.mxu0 0.0
    %912 = vmatpush1.msra.mxu0 0.0
    %913 = vmatprep.subr.mxu0 0.0
    %914 = vmatpush1.msra.mxu0 0.0
    %915 = vmatprep.subr.mxu0 %v848
    %916 = vmatpush1.msra.mxu0 %v847
    %917 = vmatprep.subr.mxu0 %v846
    %918 = vmatpush1.msra.mxu0 %v845
    %919 = vmatprep.subr.mxu0 %v844
    %920 = vmatpush1.msra.mxu0 %v843
    %921 = vmatprep.subr.mxu0 %v842
    %922 = vmatpush1.msra.mxu0 %v841
    %923 = vmatprep.subr.mxu0 0.0
    %924 = vmatpush2.msra.mxu0 0.0
    %925 = vmatprep.subr.mxu0 0.0
    %926 = vmatpush2.msra.mxu0 0.0
    %927 = vmatprep.subr.mxu0 0.0
    %928 = vmatpush2.msra.mxu0 0.0
    %929 = vmatprep.subr.mxu0 0.0
    %930 = vmatpush2.msra.mxu0 0.0
    %931 = vmatprep.subr.mxu0 0.0
    %932 = vmatpush2.msra.mxu0 0.0
    %933 = vmatprep.subr.mxu0 0.0
    %934 = vmatpush2.msra.mxu0 0.0
    %935 = vmatprep.subr.mxu0 0.0
    %936 = vmatpush2.msra.mxu0 0.0
    %937 = vmatprep.subr.mxu0 0.0
    %938 = vmatpush2.msra.mxu0 0.0
    %939 = vmatprep.subr.mxu0 0.0
    %940 = vmatpush2.msra.mxu0 0.0
    %941 = vmatprep.subr.mxu0 0.0
    %942 = vmatpush2.msra.mxu0 0.0
    %943 = vmatprep.subr.mxu0 0.0
    %944 = vmatpush2.msra.mxu0 0.0
    %945 = vmatprep.subr.mxu0 0.0
    %946 = vmatpush2.msra.mxu0 0.0
    %947 = vmatprep.subr.mxu0 0.0
    %948 = vmatpush2.msra.mxu0 0.0
    %949 = vmatprep.subr.mxu0 0.0
    %950 = vmatpush2.msra.mxu0 0.0
    %951 = vmatprep.subr.mxu0 0.0
    %952 = vmatpush2.msra.mxu0 0.0
    %953 = vmatprep.subr.mxu0 0.0
    %954 = vmatpush2.msra.mxu0 0.0
    %955 = vmatprep.mubr.f32.mxu0 0.0
    %956 = vmatmul.mubr.f32.gmra.mxu0 %v880
    %v957 = vpop.f32.mrf.mxu0
    %v958 = vadd.f32 %v862, %v957
    %v959 = vpop.f32.mrf.mxu0
    %v960 = vadd.f32 %v862, %v959
    %961 = vmatprep.mubr.f32.mxu0 0.0
    %962 = vmatmul.mubr.f32.gmra.mxu0 %v883
    %v963 = vpop.f32.mrf.mxu0
    %v964 = vadd.f32 %v867, %v963
    %v965 = vpop.f32.mrf.mxu0
    %v966 = vadd.f32 %v867, %v965
    %967 = vmatprep.mubr.f32.mxu0 0.0
    %968 = vmatmul.mubr.f32.gmra.mxu0 %v886
    %v969 = vpop.f32.mrf.mxu0
    %v970 = vadd.f32 %v872, %v969
    %v971 = vpop.f32.mrf.mxu0
    %v972 = vadd.f32 %v872, %v971
    %973 = vmatprep.mubr.f32.mxu0 0.0
    %974 = vmatmul.mubr.f32.gmra.mxu0 %v889
    %v975 = vpop.f32.mrf.mxu0
    %v976 = vadd.f32 %v877, %v975
    %v977 = vpop.f32.mrf.mxu0
    %v978 = vadd.f32 %v877, %v977
    %979 = vdwg.mxu0
    %v980 = vmax.f32 %v958, 0.0
    %v981 = vmax.f32 %v960, 0.0
    %v982 = vmax.f32 %v964, 0.0
    %v983 = vmax.f32 %v966, 0.0
    %v984 = vmax.f32 %v970, 0.0
    %v985 = vmax.f32 %v972, 0.0
    %v986 = vmax.f32 %v976, 0.0
    %v987 = vmax.f32 %v978, 0.0
    %s988 = scalar_lea.vmem %s3, 160
    %v989 = vld [vmem:[%s988] sm:$0xff]
    %v990 = vld [vmem:[%s988 + $0x8] sm:$0xff]
    %v991 = vld [vmem:[%s988 + $0x10] sm:$0xff]
    %v992 = vld [vmem:[%s988 + $0x18] sm:$0xff]
    %s993 = scalar_lea.vmem %s4, 160
    %v994 = vld [vmem:[%s993] sm:$0xff]
    %v995 = vld [vmem:[%s993 + $0x8] sm:$0xff]
    %v996 = vld [vmem:[%s993 + $0x10] sm:$0xff]
    %v997 = vld [vmem:[%s993 + $0x18] sm:$0xff]
    %999 = vset.pattern.permute.xlu0 0
    %1000 = vperm.xlu0 %999, %v994
    %v1001 = vpop.permute.xlu0 %1000
    %1004 = vset.pattern.permute.xlu0 0
    %1005 = vperm.xlu0 %1004, %v995
    %v1006 = vpop.permute.xlu0 %1005
    %1009 = vset.pattern.permute.xlu0 0
    %1010 = vperm.xlu0 %1009, %v996
    %v1011 = vpop.permute.xlu0 %1010
    %1014 = vset.pattern.permute.xlu0 0
    %1015 = vperm.xlu0 %1014, %v997
    %v1016 = vpop.permute.xlu0 %1015
    %v1019 = vsel %vm322, %v989, 0
    %v1022 = vsel %vm322, %v990, 0
    %v1025 = vsel %vm322, %v991, 0
    %v1028 = vsel %vm322, %v992, 0
    %1030 = vmatprep.subr.mxu0 0.0
    %1031 = vmatpush1.msra.mxu0 0.0
    %1032 = vmatprep.subr.mxu0 0.0
    %1033 = vmatpush1.msra.mxu0 0.0
    %1034 = vmatprep.subr.mxu0 0.0
    %1035 = vmatpush1.msra.mxu0 0.0
    %1036 = vmatprep.subr.mxu0 0.0
    %1037 = vmatpush1.msra.mxu0 0.0
    %1038 = vmatprep.subr.mxu0 0.0
    %1039 = vmatpush1.msra.mxu0 0.0
    %1040 = vmatprep.subr.mxu0 0.0
    %1041 = vmatpush1.msra.mxu0 0.0
    %1042 = vmatprep.subr.mxu0 0.0
    %1043 = vmatpush1.msra.mxu0 0.0
    %1044 = vmatprep.subr.mxu0 0.0
    %1045 = vmatpush1.msra.mxu0 0.0
    %1046 = vmatprep.subr.mxu0 0.0
    %1047 = vmatpush1.msra.mxu0 0.0
    %1048 = vmatprep.subr.mxu0 0.0
    %1049 = vmatpush1.msra.mxu0 0.0
    %1050 = vmatprep.subr.mxu0 0.0
    %1051 = vmatpush1.msra.mxu0 0.0
    %1052 = vmatprep.subr.mxu0 0.0
    %1053 = vmatpush1.msra.mxu0 0.0
    %1054 = vmatprep.subr.mxu0 %v987
    %1055 = vmatpush1.msra.mxu0 %v986
    %1056 = vmatprep.subr.mxu0 %v985
    %1057 = vmatpush1.msra.mxu0 %v984
    %1058 = vmatprep.subr.mxu0 %v983
    %1059 = vmatpush1.msra.mxu0 %v982
    %1060 = vmatprep.subr.mxu0 %v981
    %1061 = vmatpush1.msra.mxu0 %v980
    %1062 = vmatprep.subr.mxu0 0.0
    %1063 = vmatpush2.msra.mxu0 0.0
    %1064 = vmatprep.subr.mxu0 0.0
    %1065 = vmatpush2.msra.mxu0 0.0
    %1066 = vmatprep.subr.mxu0 0.0
    %1067 = vmatpush2.msra.mxu0 0.0
    %1068 = vmatprep.subr.mxu0 0.0
    %1069 = vmatpush2.msra.mxu0 0.0
    %1070 = vmatprep.subr.mxu0 0.0
    %1071 = vmatpush2.msra.mxu0 0.0
    %1072 = vmatprep.subr.mxu0 0.0
    %1073 = vmatpush2.msra.mxu0 0.0
    %1074 = vmatprep.subr.mxu0 0.0
    %1075 = vmatpush2.msra.mxu0 0.0
    %1076 = vmatprep.subr.mxu0 0.0
    %1077 = vmatpush2.msra.mxu0 0.0
    %1078 = vmatprep.subr.mxu0 0.0
    %1079 = vmatpush2.msra.mxu0 0.0
    %1080 = vmatprep.subr.mxu0 0.0
    %1081 = vmatpush2.msra.mxu0 0.0
    %1082 = vmatprep.subr.mxu0 0.0
    %1083 = vmatpush2.msra.mxu0 0.0
    %1084 = vmatprep.subr.mxu0 0.0
    %1085 = vmatpush2.msra.mxu0 0.0
    %1086 = vmatprep.subr.mxu0 0.0
    %1087 = vmatpush2.msra.mxu0 0.0
    %1088 = vmatprep.subr.mxu0 0.0
    %1089 = vmatpush2.msra.mxu0 0.0
    %1090 = vmatprep.subr.mxu0 0.0
    %1091 = vmatpush2.msra.mxu0 0.0
    %1092 = vmatprep.subr.mxu0 0.0
    %1093 = vmatpush2.msra.mxu0 0.0
    %1094 = vmatprep.mubr.f32.mxu0 0.0
    %1095 = vmatmul.mubr.f32.gmra.mxu0 %v1019
    %v1096 = vpop.f32.mrf.mxu0
    %v1097 = vadd.f32 %v1001, %v1096
    %v1098 = vpop.f32.mrf.mxu0
    %v1099 = vadd.f32 %v1001, %v1098
    %1100 = vmatprep.mubr.f32.mxu0 0.0
    %1101 = vmatmul.mubr.f32.gmra.mxu0 %v1022
    %v1102 = vpop.f32.mrf.mxu0
    %v1103 = vadd.f32 %v1006, %v1102
    %v1104 = vpop.f32.mrf.mxu0
    %v1105 = vadd.f32 %v1006, %v1104
    %1106 = vmatprep.mubr.f32.mxu0 0.0
    %1107 = vmatmul.mubr.f32.gmra.mxu0 %v1025
    %v1108 = vpop.f32.mrf.mxu0
    %v1109 = vadd.f32 %v1011, %v1108
    %v1110 = vpop.f32.mrf.mxu0
    %v1111 = vadd.f32 %v1011, %v1110
    %1112 = vmatprep.mubr.f32.mxu0 0.0
    %1113 = vmatmul.mubr.f32.gmra.mxu0 %v1028
    %v1114 = vpop.f32.mrf.mxu0
    %v1115 = vadd.f32 %v1016, %v1114
    %v1116 = vpop.f32.mrf.mxu0
    %v1117 = vadd.f32 %v1016, %v1116
    %1118 = vdwg.mxu0
    %v1119 = vmax.f32 %v1097, 0.0
    %v1120 = vmax.f32 %v1099, 0.0
    %v1121 = vmax.f32 %v1103, 0.0
    %v1122 = vmax.f32 %v1105, 0.0
    %v1123 = vmax.f32 %v1109, 0.0
    %v1124 = vmax.f32 %v1111, 0.0
    %v1125 = vmax.f32 %v1115, 0.0
    %v1126 = vmax.f32 %v1117, 0.0
    %s1127 = scalar_lea.vmem %s3, 192
    %v1128 = vld [vmem:[%s1127] sm:$0xff]
    %v1129 = vld [vmem:[%s1127 + $0x8] sm:$0xff]
    %v1130 = vld [vmem:[%s1127 + $0x10] sm:$0xff]
    %v1131 = vld [vmem:[%s1127 + $0x18] sm:$0xff]
    %s1132 = scalar_lea.vmem %s4, 192
    %v1133 = vld [vmem:[%s1132] sm:$0xff]
    %v1134 = vld [vmem:[%s1132 + $0x8] sm:$0xff]
    %v1135 = vld [vmem:[%s1132 + $0x10] sm:$0xff]
    %v1136 = vld [vmem:[%s1132 + $0x18] sm:$0xff]
    %1138 = vset.pattern.permute.xlu0 0
    %1139 = vperm.xlu0 %1138, %v1133
    %v1140 = vpop.permute.xlu0 %1139
    %1143 = vset.pattern.permute.xlu0 0
    %1144 = vperm.xlu0 %1143, %v1134
    %v1145 = vpop.permute.xlu0 %1144
    %1148 = vset.pattern.permute.xlu0 0
    %1149 = vperm.xlu0 %1148, %v1135
    %v1150 = vpop.permute.xlu0 %1149
    %1153 = vset.pattern.permute.xlu0 0
    %1154 = vperm.xlu0 %1153, %v1136
    %v1155 = vpop.permute.xlu0 %1154
    %v1158 = vsel %vm322, %v1128, 0
    %v1161 = vsel %vm322, %v1129, 0
    %v1164 = vsel %vm322, %v1130, 0
    %v1167 = vsel %vm322, %v1131, 0
    %1169 = vmatprep.subr.mxu0 0.0
    %1170 = vmatpush1.msra.mxu0 0.0
    %1171 = vmatprep.subr.mxu0 0.0
    %1172 = vmatpush1.msra.mxu0 0.0
    %1173 = vmatprep.subr.mxu0 0.0
    %1174 = vmatpush1.msra.mxu0 0.0
    %1175 = vmatprep.subr.mxu0 0.0
    %1176 = vmatpush1.msra.mxu0 0.0
    %1177 = vmatprep.subr.mxu0 0.0
    %1178 = vmatpush1.msra.mxu0 0.0
    %1179 = vmatprep.subr.mxu0 0.0
    %1180 = vmatpush1.msra.mxu0 0.0
    %1181 = vmatprep.subr.mxu0 0.0
    %1182 = vmatpush1.msra.mxu0 0.0
    %1183 = vmatprep.subr.mxu0 0.0
    %1184 = vmatpush1.msra.mxu0 0.0
    %1185 = vmatprep.subr.mxu0 0.0
    %1186 = vmatpush1.msra.mxu0 0.0
    %1187 = vmatprep.subr.mxu0 0.0
    %1188 = vmatpush1.msra.mxu0 0.0
    %1189 = vmatprep.subr.mxu0 0.0
    %1190 = vmatpush1.msra.mxu0 0.0
    %1191 = vmatprep.subr.mxu0 0.0
    %1192 = vmatpush1.msra.mxu0 0.0
    %1193 = vmatprep.subr.mxu0 %v1126
    %1194 = vmatpush1.msra.mxu0 %v1125
    %1195 = vmatprep.subr.mxu0 %v1124
    %1196 = vmatpush1.msra.mxu0 %v1123
    %1197 = vmatprep.subr.mxu0 %v1122
    %1198 = vmatpush1.msra.mxu0 %v1121
    %1199 = vmatprep.subr.mxu0 %v1120
    %1200 = vmatpush1.msra.mxu0 %v1119
    %1201 = vmatprep.subr.mxu0 0.0
    %1202 = vmatpush2.msra.mxu0 0.0
    %1203 = vmatprep.subr.mxu0 0.0
    %1204 = vmatpush2.msra.mxu0 0.0
    %1205 = vmatprep.subr.mxu0 0.0
    %1206 = vmatpush2.msra.mxu0 0.0
    %1207 = vmatprep.subr.mxu0 0.0
    %1208 = vmatpush2.msra.mxu0 0.0
    %1209 = vmatprep.subr.mxu0 0.0
    %1210 = vmatpush2.msra.mxu0 0.0
    %1211 = vmatprep.subr.mxu0 0.0
    %1212 = vmatpush2.msra.mxu0 0.0
    %1213 = vmatprep.subr.mxu0 0.0
    %1214 = vmatpush2.msra.mxu0 0.0
    %1215 = vmatprep.subr.mxu0 0.0
    %1216 = vmatpush2.msra.mxu0 0.0
    %1217 = vmatprep.subr.mxu0 0.0
    %1218 = vmatpush2.msra.mxu0 0.0
    %1219 = vmatprep.subr.mxu0 0.0
    %1220 = vmatpush2.msra.mxu0 0.0
    %1221 = vmatprep.subr.mxu0 0.0
    %1222 = vmatpush2.msra.mxu0 0.0
    %1223 = vmatprep.subr.mxu0 0.0
    %1224 = vmatpush2.msra.mxu0 0.0
    %1225 = vmatprep.subr.mxu0 0.0
    %1226 = vmatpush2.msra.mxu0 0.0
    %1227 = vmatprep.subr.mxu0 0.0
    %1228 = vmatpush2.msra.mxu0 0.0
    %1229 = vmatprep.subr.mxu0 0.0
    %1230 = vmatpush2.msra.mxu0 0.0
    %1231 = vmatprep.subr.mxu0 0.0
    %1232 = vmatpush2.msra.mxu0 0.0
    %1233 = vmatprep.mubr.f32.mxu0 0.0
    %1234 = vmatmul.mubr.f32.gmra.mxu0 %v1158
    %v1235 = vpop.f32.mrf.mxu0
    %v1236 = vadd.f32 %v1140, %v1235
    %v1237 = vpop.f32.mrf.mxu0
    %v1238 = vadd.f32 %v1140, %v1237
    %1239 = vmatprep.mubr.f32.mxu0 0.0
    %1240 = vmatmul.mubr.f32.gmra.mxu0 %v1161
    %v1241 = vpop.f32.mrf.mxu0
    %v1242 = vadd.f32 %v1145, %v1241
    %v1243 = vpop.f32.mrf.mxu0
    %v1244 = vadd.f32 %v1145, %v1243
    %1245 = vmatprep.mubr.f32.mxu0 0.0
    %1246 = vmatmul.mubr.f32.gmra.mxu0 %v1164
    %v1247 = vpop.f32.mrf.mxu0
    %v1248 = vadd.f32 %v1150, %v1247
    %v1249 = vpop.f32.mrf.mxu0
    %v1250 = vadd.f32 %v1150, %v1249
    %1251 = vmatprep.mubr.f32.mxu0 0.0
    %1252 = vmatmul.mubr.f32.gmra.mxu0 %v1167
    %v1253 = vpop.f32.mrf.mxu0
    %v1254 = vadd.f32 %v1155, %v1253
    %v1255 = vpop.f32.mrf.mxu0
    %v1256 = vadd.f32 %v1155, %v1255
    %1257 = vdwg.mxu0
    %v1258 = vmax.f32 %v1236, 0.0
    %v1259 = vmax.f32 %v1238, 0.0
    %v1260 = vmax.f32 %v1242, 0.0
    %v1261 = vmax.f32 %v1244, 0.0
    %v1262 = vmax.f32 %v1248, 0.0
    %v1263 = vmax.f32 %v1250, 0.0
    %v1264 = vmax.f32 %v1254, 0.0
    %v1265 = vmax.f32 %v1256, 0.0
    %s1266 = scalar_lea.vmem %s3, 224
    %v1267 = vld [vmem:[%s1266] sm:$0xff]
    %v1268 = vld [vmem:[%s1266 + $0x8] sm:$0xff]
    %v1269 = vld [vmem:[%s1266 + $0x10] sm:$0xff]
    %v1270 = vld [vmem:[%s1266 + $0x18] sm:$0xff]
    %s1271 = scalar_lea.vmem %s4, 224
    %v1272 = vld [vmem:[%s1271] sm:$0xff]
    %v1273 = vld [vmem:[%s1271 + $0x8] sm:$0xff]
    %v1274 = vld [vmem:[%s1271 + $0x10] sm:$0xff]
    %v1275 = vld [vmem:[%s1271 + $0x18] sm:$0xff]
    %1277 = vset.pattern.permute.xlu0 0
    %1278 = vperm.xlu0 %1277, %v1272
    %v1279 = vpop.permute.xlu0 %1278
    %1282 = vset.pattern.permute.xlu0 0
    %1283 = vperm.xlu0 %1282, %v1273
    %v1284 = vpop.permute.xlu0 %1283
    %1287 = vset.pattern.permute.xlu0 0
    %1288 = vperm.xlu0 %1287, %v1274
    %v1289 = vpop.permute.xlu0 %1288
    %1292 = vset.pattern.permute.xlu0 0
    %1293 = vperm.xlu0 %1292, %v1275
    %v1294 = vpop.permute.xlu0 %1293
    %v1297 = vsel %vm322, %v1267, 0
    %v1300 = vsel %vm322, %v1268, 0
    %v1303 = vsel %vm322, %v1269, 0
    %v1306 = vsel %vm322, %v1270, 0
    %1308 = vmatprep.subr.mxu0 0.0
    %1309 = vmatpush1.msra.mxu0 0.0
    %1310 = vmatprep.subr.mxu0 0.0
    %1311 = vmatpush1.msra.mxu0 0.0
    %1312 = vmatprep.subr.mxu0 0.0
    %1313 = vmatpush1.msra.mxu0 0.0
    %1314 = vmatprep.subr.mxu0 0.0
    %1315 = vmatpush1.msra.mxu0 0.0
    %1316 = vmatprep.subr.mxu0 0.0
    %1317 = vmatpush1.msra.mxu0 0.0
    %1318 = vmatprep.subr.mxu0 0.0
    %1319 = vmatpush1.msra.mxu0 0.0
    %1320 = vmatprep.subr.mxu0 0.0
    %1321 = vmatpush1.msra.mxu0 0.0
    %1322 = vmatprep.subr.mxu0 0.0
    %1323 = vmatpush1.msra.mxu0 0.0
    %1324 = vmatprep.subr.mxu0 0.0
    %1325 = vmatpush1.msra.mxu0 0.0
    %1326 = vmatprep.subr.mxu0 0.0
    %1327 = vmatpush1.msra.mxu0 0.0
    %1328 = vmatprep.subr.mxu0 0.0
    %1329 = vmatpush1.msra.mxu0 0.0
    %1330 = vmatprep.subr.mxu0 0.0
    %1331 = vmatpush1.msra.mxu0 0.0
    %1332 = vmatprep.subr.mxu0 %v1265
    %1333 = vmatpush1.msra.mxu0 %v1264
    %1334 = vmatprep.subr.mxu0 %v1263
    %1335 = vmatpush1.msra.mxu0 %v1262
    %1336 = vmatprep.subr.mxu0 %v1261
    %1337 = vmatpush1.msra.mxu0 %v1260
    %1338 = vmatprep.subr.mxu0 %v1259
    %1339 = vmatpush1.msra.mxu0 %v1258
    %1340 = vmatprep.subr.mxu0 0.0
    %1341 = vmatpush2.msra.mxu0 0.0
    %1342 = vmatprep.subr.mxu0 0.0
    %1343 = vmatpush2.msra.mxu0 0.0
    %1344 = vmatprep.subr.mxu0 0.0
    %1345 = vmatpush2.msra.mxu0 0.0
    %1346 = vmatprep.subr.mxu0 0.0
    %1347 = vmatpush2.msra.mxu0 0.0
    %1348 = vmatprep.subr.mxu0 0.0
    %1349 = vmatpush2.msra.mxu0 0.0
    %1350 = vmatprep.subr.mxu0 0.0
    %1351 = vmatpush2.msra.mxu0 0.0
    %1352 = vmatprep.subr.mxu0 0.0
    %1353 = vmatpush2.msra.mxu0 0.0
    %1354 = vmatprep.subr.mxu0 0.0
    %1355 = vmatpush2.msra.mxu0 0.0
    %1356 = vmatprep.subr.mxu0 0.0
    %1357 = vmatpush2.msra.mxu0 0.0
    %1358 = vmatprep.subr.mxu0 0.0
    %1359 = vmatpush2.msra.mxu0 0.0
    %1360 = vmatprep.subr.mxu0 0.0
    %1361 = vmatpush2.msra.mxu0 0.0
    %1362 = vmatprep.subr.mxu0 0.0
    %1363 = vmatpush2.msra.mxu0 0.0
    %1364 = vmatprep.subr.mxu0 0.0
    %1365 = vmatpush2.msra.mxu0 0.0
    %1366 = vmatprep.subr.mxu0 0.0
    %1367 = vmatpush2.msra.mxu0 0.0
    %1368 = vmatprep.subr.mxu0 0.0
    %1369 = vmatpush2.msra.mxu0 0.0
    %1370 = vmatprep.subr.mxu0 0.0
    %1371 = vmatpush2.msra.mxu0 0.0
    %1372 = vmatprep.mubr.f32.mxu0 0.0
    %1373 = vmatmul.mubr.f32.gmra.mxu0 %v1297
    %v1374 = vpop.f32.mrf.mxu0
    %v1375 = vadd.f32 %v1279, %v1374
    %v1376 = vpop.f32.mrf.mxu0
    %v1377 = vadd.f32 %v1279, %v1376
    %1378 = vmatprep.mubr.f32.mxu0 0.0
    %1379 = vmatmul.mubr.f32.gmra.mxu0 %v1300
    %v1380 = vpop.f32.mrf.mxu0
    %v1381 = vadd.f32 %v1284, %v1380
    %v1382 = vpop.f32.mrf.mxu0
    %v1383 = vadd.f32 %v1284, %v1382
    %1384 = vmatprep.mubr.f32.mxu0 0.0
    %1385 = vmatmul.mubr.f32.gmra.mxu0 %v1303
    %v1386 = vpop.f32.mrf.mxu0
    %v1387 = vadd.f32 %v1289, %v1386
    %v1388 = vpop.f32.mrf.mxu0
    %v1389 = vadd.f32 %v1289, %v1388
    %1390 = vmatprep.mubr.f32.mxu0 0.0
    %1391 = vmatmul.mubr.f32.gmra.mxu0 %v1306
    %v1392 = vpop.f32.mrf.mxu0
    %v1393 = vadd.f32 %v1294, %v1392
    %v1394 = vpop.f32.mrf.mxu0
    %v1395 = vadd.f32 %v1294, %v1394
    %1396 = vdwg.mxu0
    %v1397 = vmax.f32 %v1375, 0.0
    %v1398 = vmax.f32 %v1377, 0.0
    %v1399 = vmax.f32 %v1381, 0.0
    %v1400 = vmax.f32 %v1383, 0.0
    %v1401 = vmax.f32 %v1387, 0.0
    %v1402 = vmax.f32 %v1389, 0.0
    %v1403 = vmax.f32 %v1393, 0.0
    %v1404 = vmax.f32 %v1395, 0.0
    %s1405 = scalar_lea.vmem %s3, 256
    %v1406 = vld [vmem:[%s1405] sm:$0xff]
    %v1407 = vld [vmem:[%s1405 + $0x8] sm:$0xff]
    %v1408 = vld [vmem:[%s1405 + $0x10] sm:$0xff]
    %v1409 = vld [vmem:[%s1405 + $0x18] sm:$0xff]
    %s1410 = scalar_lea.vmem %s4, 256
    %v1411 = vld [vmem:[%s1410] sm:$0xff]
    %v1412 = vld [vmem:[%s1410 + $0x8] sm:$0xff]
    %v1413 = vld [vmem:[%s1410 + $0x10] sm:$0xff]
    %v1414 = vld [vmem:[%s1410 + $0x18] sm:$0xff]
    %1416 = vset.pattern.permute.xlu0 0
    %1417 = vperm.xlu0 %1416, %v1411
    %v1418 = vpop.permute.xlu0 %1417
    %1421 = vset.pattern.permute.xlu0 0
    %1422 = vperm.xlu0 %1421, %v1412
    %v1423 = vpop.permute.xlu0 %1422
    %1426 = vset.pattern.permute.xlu0 0
    %1427 = vperm.xlu0 %1426, %v1413
    %v1428 = vpop.permute.xlu0 %1427
    %1431 = vset.pattern.permute.xlu0 0
    %1432 = vperm.xlu0 %1431, %v1414
    %v1433 = vpop.permute.xlu0 %1432
    %v1436 = vsel %vm322, %v1406, 0
    %v1439 = vsel %vm322, %v1407, 0
    %v1442 = vsel %vm322, %v1408, 0
    %v1445 = vsel %vm322, %v1409, 0
    %1447 = vmatprep.subr.mxu0 0.0
    %1448 = vmatpush1.msra.mxu0 0.0
    %1449 = vmatprep.subr.mxu0 0.0
    %1450 = vmatpush1.msra.mxu0 0.0
    %1451 = vmatprep.subr.mxu0 0.0
    %1452 = vmatpush1.msra.mxu0 0.0
    %1453 = vmatprep.subr.mxu0 0.0
    %1454 = vmatpush1.msra.mxu0 0.0
    %1455 = vmatprep.subr.mxu0 0.0
    %1456 = vmatpush1.msra.mxu0 0.0
    %1457 = vmatprep.subr.mxu0 0.0
    %1458 = vmatpush1.msra.mxu0 0.0
    %1459 = vmatprep.subr.mxu0 0.0
    %1460 = vmatpush1.msra.mxu0 0.0
    %1461 = vmatprep.subr.mxu0 0.0
    %1462 = vmatpush1.msra.mxu0 0.0
    %1463 = vmatprep.subr.mxu0 0.0
    %1464 = vmatpush1.msra.mxu0 0.0
    %1465 = vmatprep.subr.mxu0 0.0
    %1466 = vmatpush1.msra.mxu0 0.0
    %1467 = vmatprep.subr.mxu0 0.0
    %1468 = vmatpush1.msra.mxu0 0.0
    %1469 = vmatprep.subr.mxu0 0.0
    %1470 = vmatpush1.msra.mxu0 0.0
    %1471 = vmatprep.subr.mxu0 %v1404
    %1472 = vmatpush1.msra.mxu0 %v1403
    %1473 = vmatprep.subr.mxu0 %v1402
    %1474 = vmatpush1.msra.mxu0 %v1401
    %1475 = vmatprep.subr.mxu0 %v1400
    %1476 = vmatpush1.msra.mxu0 %v1399
    %1477 = vmatprep.subr.mxu0 %v1398
    %1478 = vmatpush1.msra.mxu0 %v1397
    %1479 = vmatprep.subr.mxu0 0.0
    %1480 = vmatpush2.msra.mxu0 0.0
    %1481 = vmatprep.subr.mxu0 0.0
    %1482 = vmatpush2.msra.mxu0 0.0
    %1483 = vmatprep.subr.mxu0 0.0
    %1484 = vmatpush2.msra.mxu0 0.0
    %1485 = vmatprep.subr.mxu0 0.0
    %1486 = vmatpush2.msra.mxu0 0.0
    %1487 = vmatprep.subr.mxu0 0.0
    %1488 = vmatpush2.msra.mxu0 0.0
    %1489 = vmatprep.subr.mxu0 0.0
    %1490 = vmatpush2.msra.mxu0 0.0
    %1491 = vmatprep.subr.mxu0 0.0
    %1492 = vmatpush2.msra.mxu0 0.0
    %1493 = vmatprep.subr.mxu0 0.0
    %1494 = vmatpush2.msra.mxu0 0.0
    %1495 = vmatprep.subr.mxu0 0.0
    %1496 = vmatpush2.msra.mxu0 0.0
    %1497 = vmatprep.subr.mxu0 0.0
    %1498 = vmatpush2.msra.mxu0 0.0
    %1499 = vmatprep.subr.mxu0 0.0
    %1500 = vmatpush2.msra.mxu0 0.0
    %1501 = vmatprep.subr.mxu0 0.0
    %1502 = vmatpush2.msra.mxu0 0.0
    %1503 = vmatprep.subr.mxu0 0.0
    %1504 = vmatpush2.msra.mxu0 0.0
    %1505 = vmatprep.subr.mxu0 0.0
    %1506 = vmatpush2.msra.mxu0 0.0
    %1507 = vmatprep.subr.mxu0 0.0
    %1508 = vmatpush2.msra.mxu0 0.0
    %1509 = vmatprep.subr.mxu0 0.0
    %1510 = vmatpush2.msra.mxu0 0.0
    %1511 = vmatprep.mubr.f32.mxu0 0.0
    %1512 = vmatmul.mubr.f32.gmra.mxu0 %v1436
    %v1513 = vpop.f32.mrf.mxu0
    %v1514 = vadd.f32 %v1418, %v1513
    %v1515 = vpop.f32.mrf.mxu0
    %v1516 = vadd.f32 %v1418, %v1515
    %1517 = vmatprep.mubr.f32.mxu0 0.0
    %1518 = vmatmul.mubr.f32.gmra.mxu0 %v1439
    %v1519 = vpop.f32.mrf.mxu0
    %v1520 = vadd.f32 %v1423, %v1519
    %v1521 = vpop.f32.mrf.mxu0
    %v1522 = vadd.f32 %v1423, %v1521
    %1523 = vmatprep.mubr.f32.mxu0 0.0
    %1524 = vmatmul.mubr.f32.gmra.mxu0 %v1442
    %v1525 = vpop.f32.mrf.mxu0
    %v1526 = vadd.f32 %v1428, %v1525
    %v1527 = vpop.f32.mrf.mxu0
    %v1528 = vadd.f32 %v1428, %v1527
    %1529 = vmatprep.mubr.f32.mxu0 0.0
    %1530 = vmatmul.mubr.f32.gmra.mxu0 %v1445
    %v1531 = vpop.f32.mrf.mxu0
    %v1532 = vadd.f32 %v1433, %v1531
    %v1533 = vpop.f32.mrf.mxu0
    %v1534 = vadd.f32 %v1433, %v1533
    %1535 = vdwg.mxu0
    %v1536 = vmax.f32 %v1514, 0.0
    %v1537 = vmax.f32 %v1516, 0.0
    %v1538 = vmax.f32 %v1520, 0.0
    %v1539 = vmax.f32 %v1522, 0.0
    %v1540 = vmax.f32 %v1526, 0.0
    %v1541 = vmax.f32 %v1528, 0.0
    %v1542 = vmax.f32 %v1532, 0.0
    %v1543 = vmax.f32 %v1534, 0.0
    %v1544 = vld [vmem:[%s5] sm:$0xff]
    %v1545 = vld [vmem:[%s5 + $0x8] sm:$0xff]
    %v1546 = vld [vmem:[%s5 + $0x10] sm:$0xff]
    %v1547 = vld [vmem:[%s5 + $0x18] sm:$0xff]
    %1549 = vset.pattern.permute.xlu0 0
    %1550 = vperm.xlu0 %1549, %v1544
    %v1551 = vpop.permute.xlu0 %1550
    %1554 = vset.pattern.permute.xlu0 0
    %1555 = vperm.xlu0 %1554, %v1545
    %v1556 = vpop.permute.xlu0 %1555
    %1559 = vset.pattern.permute.xlu0 0
    %1560 = vperm.xlu0 %1559, %v1546
    %v1561 = vpop.permute.xlu0 %1560
    %1564 = vset.pattern.permute.xlu0 0
    %1565 = vperm.xlu0 %1564, %v1547
    %v1566 = vpop.permute.xlu0 %1565
    %v1568 = vmul.f32 %v1536, %v1551
    %v1569 = vmul.f32 %v1537, %v1551
    %v1570 = vmul.f32 %v1538, %v1556
    %v1571 = vmul.f32 %v1539, %v1556
    %v1572 = vmul.f32 %v1540, %v1561
    %v1573 = vmul.f32 %v1541, %v1561
    %v1574 = vmul.f32 %v1542, %v1566
    %v1575 = vmul.f32 %v1543, %v1566
    %v1576 = vadd.f32 %v1568, %v1570
    %v1577 = vadd.f32 %v1576, %v1572
    %v1578 = vadd.f32 %v1577, %v1574
    %v1579 = vrot.slane %v1578, 4
    %v1580 = vadd.f32 %v1578, %v1579
    %v1581 = vrot.slane %v1580, 2
    %v1582 = vadd.f32 %v1580, %v1581
    %v1583 = vrot.slane %v1582, 1
    %v1584 = vadd.f32 %v1582, %v1583
    %v1585 = vadd.f32 %v1569, %v1571
    %v1586 = vadd.f32 %v1585, %v1573
    %v1587 = vadd.f32 %v1586, %v1575
    %v1588 = vrot.slane %v1587, 4
    %v1589 = vadd.f32 %v1587, %v1588
    %v1590 = vrot.slane %v1589, 2
    %v1591 = vadd.f32 %v1589, %v1590
    %v1592 = vrot.slane %v1591, 1
    %v1593 = vadd.f32 %v1591, %v1592
    %s1594 = sld [smem:[#allocation2]]
    %v1595 = vstv %s1594
    %v1596 = vadd.f32 %v1584, %v1595
    %v1597 = vadd.f32 %v1593, %v1595
    %v1600 = vcombine.low %v1596, %v1597
    %v1602 = vunpack.c.l.s4 1966171168
    %v1603 = vunpack.c.0.s8 %v1602
    %v1604 = vlaneseq
    %v1605 = vshrl.u32 %v1604, 7
    %v1606 = vsub.s32 %v1603, %v1605
    %v1607 = vrot.slane %v1600, %v1606
    %v1609 = vunpack.c.l.s4 1966171168
    %v1610 = vunpack.c.0.s8 %v1609
    %v1611 = vlaneseq
    %v1612 = vshrl.u32 %v1611, 7
    %v1613 = vsub.s32 %v1610, %v1612
    %v1614 = vrot.slane %v1607, %v1613
    %v1616 = vlaneseq
    %vm1617 = vcmp.ge.s32.totalorder %v1616, 0
    %vm1618 = vcmp.lt.s32.totalorder %v1616, 256
    %vm1619 = vmand %vm1617, %vm1618
    %1620 = vst.msk [vmem:[#allocation3] sm:$0x3] %vm1619, %v1614
    // Predicated region
    $region30: #{tpu_custom_call.1} parent=1 // pred_check
      _
    $region31: #{tpu_custom_call.1} parent=1 // pred_check_branch
      %1622 = sbr.rel (0) target = $region33
    $region32: #{tpu_custom_call.1} parent=1 // pred_region
      %s1624 = ssub.s32 32, 32
      %1625 = vsyncadd [#allocation4], %s1624
      %s1627 = sshll.u32 [#allocation3], 4
      %s1628 = int_to_ptr.vmem [resolvable:$true] %s1627
      %1630 = dma.vmem_to_hbm [thread:$0]  %s1628, 32, %s7, [#allocation4]
    $region33: #{tpu_custom_call.1} parent=1 // pred_fallthru
      _
    // Predicated region
    $region34: #{tpu_custom_call.1} parent=1 // pred_check
      _
    $region35: #{tpu_custom_call.1} parent=1 // pred_check_branch
      %1632 = sbr.rel (0) target = $region37
    $region36: #{tpu_custom_call.1} parent=1 // pred_region
      %1633 = dma.done [#allocation4], 32
    $region37: #{tpu_custom_call.1} parent=1 // pred_fallthru
      _
    %1634 = vsyncpa [#allocation4], 1

</llo_original>
